<compile_context>
chip_gen: v5e
topology: v5e:2x2
jax: 0.10.0
libtpu: 0.0.40
codegen_flags: <defaults>
</compile_context>

<pallas_src>
import functools

import jax
import jax.numpy as jnp
import numpy as np
from jax.experimental import pallas as pl
from jax.experimental.pallas import tpu as pltpu


def _haar_matrices(s):
    """Single-level orthonormal Haar analysis/synthesis matrices.

    coefficients = u @ hdwt   (approx coefficients first, detail coefficients last)
    signal       = c @ hidwt
    """
    # TODO(synk): Wavelets.HaarDWT source is not in the spec; this is the standard
    # single-level orthonormal Haar transform (matches the accepted reference).
    assert s % 2 == 0, "Haar DWT needs an even length"
    h = np.zeros((s, s), dtype=np.float32)
    r = 1.0 / np.sqrt(2.0)
    for k in range(s // 2):
        h[k, 2 * k] = r
        h[k, 2 * k + 1] = r
        h[s // 2 + k, 2 * k] = r
        h[s // 2 + k, 2 * k + 1] = -r
    return jnp.asarray(h.T), jnp.asarray(h)


def _net1d_kernel(x_ref, m_ref, bias_ref, r_ref, o_ref, *, b2):
    # x_ref   : (TB, 2*S)      flat input tile (row = one batch element, (s, c)-major)
    # m_ref   : (2*S, S*128)   folded fc0 + HaarDWT + spectral mix + IHaarDWT + fc1 (bf16)
    # bias_ref: (1, S*128)     folded bias (b0 pushed through the chain, plus b1), f32
    # r_ref   : (S*128, Npad)  block-diagonal fc2 weight, N padded to >=128 lanes (bf16)
    # o_ref   : (TB, Npad)     lane-dense output tile; column s holds y[b, s]
    cd = m_ref.dtype
    # Stage 1 (MXU): the entire pre-ReLU network as one matmul, f32 accumulation.
    h = jnp.dot(x_ref[...].astype(cd), m_ref[...],
                preferred_element_type=jnp.float32) + bias_ref[...]
    h = jnp.maximum(h, 0.0)                                            # ReLU (f32, VPU)
    # Stage 2 (MXU): fc2 as a block-diagonal matmul; lands directly lane-dense.
    o_ref[...] = jnp.dot(h.astype(cd), r_ref[...],
                         preferred_element_type=jnp.float32) + b2


def _fold_params(params, *, S, keep, compute_dtype):
    """Host-side (f32) fold of every linear stage around the ReLU — free layout plumbing."""
    w0, b0, wk, w1, b1, w2, b2 = params
    W = w0.shape[1]
    n_fc1 = w1.shape[1]                                   # 128
    assert keep == S, "WaveletBlock1d einsum is only shape-valid when keep == input_len"
    assert wk.shape == (W, W, keep)
    hdwt, hidwt = _haar_matrices(S)

    # Pre-ReLU operator M[(s_in, c), (s_out, j)] and its bias (b0 through the chain + b1).
    m_op = jnp.einsum("ci,sx,iox,xt,oj->sctj", w0, hdwt, wk, hidwt, w1)
    m_op = m_op.reshape(2 * S, S * n_fc1)
    bias = jnp.einsum("i,sx,iox,xt,oj->tj", b0.reshape(-1), hdwt, wk, hidwt, w1)
    bias = (bias + b1.reshape(1, n_fc1)).reshape(1, S * n_fc1)

    # fc2 folded into a block-diagonal matrix; N padded to a multiple of 128 lanes so the
    # final store is unmasked and lane-dense (extra columns are sliced off on the host).
    n_pad = max(128, ((S + 127) // 128) * 128)
    r_small = jnp.eye(S, dtype=jnp.float32)[:, None, :] * w2.reshape(1, n_fc1, 1)
    r_op = jnp.zeros((S, n_fc1, n_pad), jnp.float32).at[:, :, :S].set(r_small)
    r_op = r_op.reshape(S * n_fc1, n_pad)

    return (m_op.astype(compute_dtype), bias.astype(jnp.float32),
            r_op.astype(compute_dtype), float(jnp.reshape(b2, (-1,))[0]), n_pad)


def _dual_tensorcore_chip():
    try:
        kind = jax.devices()[0].device_kind.lower()
    except Exception:
        return False
    return ("v7" in kind) or ("7x" in kind)


def net1d_forward(x, params, *, keep, batch_tile=None, compute_dtype=jnp.bfloat16):
    """x: (B, S, 2) float32 -> (B, S) float32 (matches Net1d(...)(x).squeeze())."""
    B, S, two = x.shape
    assert two == 2
    assert S % 2 == 0, "Haar DWT needs an even length"

    m_op, bias, r_op, b2_val, n_pad = _fold_params(
        params, S=S, keep=keep, compute_dtype=compute_dtype)

    # Grid sizing: single-TC v5e/v6e -> one step (no per-step overhead, biggest matmul M);
    # dual-TC v7x -> two "parallel" steps so both TensorCores get work.  For large B, cap
    # TB so the f32 activation slab (TB * S*128 * 4 B) stays well inside scoped VMEM.
    if batch_tile is None:
        n_tiles = 2 if _dual_tensorcore_chip() else 1
        batch_tile = -(-B // n_tiles)
    TB = max(8, ((int(batch_tile) + 7) // 8) * 8)            # sublane-aligned batch tile
    vmem_rows = (8 * 1024 * 1024) // (S * 128 * 4)           # keep h under ~8 MiB
    TB = min(TB, max(8, (vmem_rows // 8) * 8))
    Bp = pl.cdiv(B, TB) * TB

    xp = x if Bp == B else jnp.concatenate(
        [x, jnp.zeros((Bp - B, S, 2), x.dtype)], axis=0)
    x_flat = xp.reshape(Bp, 2 * S).astype(jnp.float32)       # (s, c)-major flat slab

    out = pl.pallas_call(
        functools.partial(_net1d_kernel, b2=b2_val),
        out_shape=jax.ShapeDtypeStruct((Bp, n_pad), jnp.float32),
        grid=(Bp // TB,),
        in_specs=[
            pl.BlockSpec((TB, 2 * S), lambda g: (g, 0)),     # x (flat slab)
            pl.BlockSpec(m_op.shape, lambda g: (0, 0)),      # folded pre-ReLU operator
            pl.BlockSpec(bias.shape, lambda g: (0, 0)),      # folded pre-ReLU bias
            pl.BlockSpec(r_op.shape, lambda g: (0, 0)),      # folded fc2 operator
        ],
        out_specs=pl.BlockSpec((TB, n_pad), lambda g: (g, 0)),
        compiler_params=pltpu.CompilerParams(
            dimension_semantics=("parallel",)),
    )(x_flat, m_op, bias, r_op)

    return out[:B, :S]


def net1d_reference(x, params, *, keep):
    """Pure-JAX reference mirroring the PyTorch forward (matrix-form Haar DWT)."""
    w0, b0, wk, w1, b1, w2, b2 = params
    S = x.shape[1]
    hdwt, hidwt = _haar_matrices(S)
    h0 = x @ w0 + b0                                  # (B, S, W)
    u = jnp.transpose(h0, (0, 2, 1))                  # (B, W, S)
    coef = u @ hdwt                                   # DWT
    pos = jax.lax.broadcasted_iota(jnp.int32, coef.shape, 2)
    z = jnp.where(pos < keep, coef, 0.0)
    m = jnp.einsum("bix,iox->box", z, wk)
    v = m @ hidwt                                     # IDWT
    g = jnp.transpose(v, (0, 2, 1))                   # (B, S, W)
    h1 = jax.nn.relu(g @ w1 + b1)
    h2 = h1 @ w2 + b2                                 # (B, S, 1)
    return jnp.squeeze(h2, axis=-1)


def init_params(key, *, width, input_len, keep):
    ks = jax.random.split(key, 7)
    f32 = jnp.float32
    w0 = jax.random.uniform(ks[0], (2, width), f32, -0.5, 0.5)
    b0 = jax.random.uniform(ks[1], (1, width), f32, -0.5, 0.5)
    scale = 1.0 / (width ** 2)
    wk = scale * jax.random.uniform(ks[2], (width, width, keep), f32)
    w1 = jax.random.uniform(ks[3], (width, 128), f32, -0.1, 0.1)
    b1 = jax.random.uniform(ks[4], (1, 128), f32, -0.1, 0.1)
    w2 = jax.random.uniform(ks[5], (128, 1), f32, -0.1, 0.1)
    b2 = jax.random.uniform(ks[6], (1, 1), f32, -0.1, 0.1)
    return (w0, b0, wk, w1, b1, w2, b2)


if __name__ == "__main__":
    B, S, WIDTH = 16, 16, 32
    KEEP = S  # einsum in WaveletBlock1d is only shape-valid when keep == input_len

    key = jax.random.PRNGKey(0)
    kx, kp = jax.random.split(key)
    x = jax.random.normal(kx, (B, S, 2), dtype=jnp.float32)
    params = init_params(kp, width=WIDTH, input_len=S, keep=KEEP)

    out = net1d_forward(x, params, keep=KEEP)
    out = jax.block_until_ready(out)

    ref = net1d_reference(x, params, keep=KEEP)
    assert out.shape == (B, S), out.shape
    # bf16 MXU operands with f32 accumulation -> ~1e-2 tolerance.
    np.testing.assert_allclose(np.asarray(out), np.asarray(ref),
                               rtol=1e-2, atol=1e-2)
    print("KERNEL_OK")
</pallas_src>

<mosaic_0001>
module attributes {stable_mosaic.version = 11 : i64} {
  func.func @_net1d_kernel(%arg0: i32, %arg1: memref<16x32xf32, #tpu.memory_space<vmem>>, %arg2: memref<32x2048xbf16, #tpu.memory_space<vmem>>, %arg3: memref<1x2048xf32, #tpu.memory_space<vmem>>, %arg4: memref<2048x128xbf16, #tpu.memory_space<vmem>>, %arg5: memref<16x128xf32, #tpu.memory_space<vmem>>) attributes {dimension_semantics = [#tpu.dimension_semantics<parallel>], iteration_bounds = array<i64: 1>, scalar_prefetch = 0 : i64, scratch_operands = 0 : i64, tpu.core_type = #tpu.core_type<tc>, window_params = [{transform_indices = @transform_0, window_bounds = array<i64: 16, 32>}, {pipeline_mode = #tpu.pipeline_mode<synchronous>, transform_indices = @transform_1, window_bounds = array<i64: 32, 2048>}, {pipeline_mode = #tpu.pipeline_mode<synchronous>, transform_indices = @transform_2, window_bounds = array<i64: 1, 2048>}, {pipeline_mode = #tpu.pipeline_mode<synchronous>, transform_indices = @transform_3, window_bounds = array<i64: 2048, 128>}, {transform_indices = @transform_4, window_bounds = array<i64: 16, 128>}]} {
    %c0 = arith.constant 0 : index
    %c0_0 = arith.constant 0 : index
    %0 = vector.load %arg1[%c0, %c0_0] : memref<16x32xf32, #tpu.memory_space<vmem>>, vector<16x32xf32>
    %1 = arith.truncf %0 : vector<16x32xf32> to vector<16x32xbf16>
    %c0_1 = arith.constant 0 : index
    %c0_2 = arith.constant 0 : index
    %2 = vector.load %arg2[%c0_1, %c0_2] : memref<32x2048xbf16, #tpu.memory_space<vmem>>, vector<32x2048xbf16>
    %cst = arith.constant dense<0.000000e+00> : vector<16x2048xf32>
    %3 = tpu.matmul %1, %2, %cst {dimension_numbers = #tpu.dot_dimension_numbers<[1], [0], [0], [1], [0, 0, 1, 1], [], []>} : vector<16x32xbf16>, vector<32x2048xbf16>, vector<16x2048xf32> -> vector<16x2048xf32>
    %c0_3 = arith.constant 0 : index
    %c0_4 = arith.constant 0 : index
    %4 = vector.load %arg3[%c0_3, %c0_4] : memref<1x2048xf32, #tpu.memory_space<vmem>>, vector<1x2048xf32>
    %5 = vector.broadcast %4 : vector<1x2048xf32> to vector<16x2048xf32>
    %6 = arith.addf %3, %5 : vector<16x2048xf32>
    %cst_5 = arith.constant 0.000000e+00 : f32
    %7 = vector.broadcast %cst_5 : f32 to vector<16x2048xf32>
    %8 = arith.maximumf %6, %7 : vector<16x2048xf32>
    %9 = arith.truncf %8 : vector<16x2048xf32> to vector<16x2048xbf16>
    %c0_6 = arith.constant 0 : index
    %c0_7 = arith.constant 0 : index
    %10 = vector.load %arg4[%c0_6, %c0_7] : memref<2048x128xbf16, #tpu.memory_space<vmem>>, vector<2048x128xbf16>
    %cst_8 = arith.constant dense<0.000000e+00> : vector<16x128xf32>
    %11 = tpu.matmul %9, %10, %cst_8 {dimension_numbers = #tpu.dot_dimension_numbers<[1], [0], [0], [1], [0, 0, 1, 1], [], []>} : vector<16x2048xbf16>, vector<2048x128xbf16>, vector<16x128xf32> -> vector<16x128xf32>
    %cst_9 = arith.constant -0.08770857 : f32
    %12 = vector.broadcast %cst_9 : f32 to vector<16x128xf32>
    %13 = arith.addf %11, %12 : vector<16x128xf32>
    %c0_10 = arith.constant 0 : index
    %c0_11 = arith.constant 0 : index
    %14 = vector.load %arg5[%c0_10, %c0_11] : memref<16x128xf32, #tpu.memory_space<vmem>>, vector<16x128xf32>
    tpu.vector_store %arg5[%c0_10, %c0_11], %13 {strides = array<i32>} : memref<16x128xf32, #tpu.memory_space<vmem>>, vector<16x128xf32>,
    return
  }
  func.func @transform_0(%arg0: i32) -> (i32, i32) {
    %c0_i32 = arith.constant 0 : i32
    %c0_i32_0 = arith.constant 0 : i32
    return %arg0, %c0_i32 : i32, i32
  }
  func.func @transform_1(%arg0: i32) -> (i32, i32) {
    %c0_i32 = arith.constant 0 : i32
    %c0_i32_0 = arith.constant 0 : i32
    %c0_i32_1 = arith.constant 0 : i32
    return %c0_i32, %c0_i32_0 : i32, i32
  }
  func.func @transform_2(%arg0: i32) -> (i32, i32) {
    %c0_i32 = arith.constant 0 : i32
    %c0_i32_0 = arith.constant 0 : i32
    %c0_i32_1 = arith.constant 0 : i32
    return %c0_i32, %c0_i32_0 : i32, i32
  }
  func.func @transform_3(%arg0: i32) -> (i32, i32) {
    %c0_i32 = arith.constant 0 : i32
    %c0_i32_0 = arith.constant 0 : i32
    %c0_i32_1 = arith.constant 0 : i32
    return %c0_i32, %c0_i32_0 : i32, i32
  }
  func.func @transform_4(%arg0: i32) -> (i32, i32) {
    %c0_i32 = arith.constant 0 : i32
    %c0_i32_0 = arith.constant 0 : i32
    return %arg0, %c0_i32 : i32, i32
  }
}

</mosaic_0001>

<llo_original>
// kernel: tpu_custom_call.1
$region0: #{tpu_custom_call.1}
  #allocation0 [shape = 'u32[]', space=smem, size = 0x4, offset = 0x4, fixed_abs, tag = 'smem constant byte address 0x4 - core index']
  #allocation1 [shape = 'u32[72,128]{1,0:T(1,128)}', space=vmem, size = 0x9000, scoped, tag = 'internal scratch']
  %s0 = inlined_call_operand.hbm [shape: f32[16,32], index: 0, kind: input, shape index: {}]
  %s1 = inlined_call_operand.hbm [shape: bf16[32,2048], index: 1, kind: input, shape index: {}]
  %s2 = inlined_call_operand.hbm [shape: f32[1,2048], index: 2, kind: input, shape index: {}]
  %s3 = inlined_call_operand.hbm [shape: bf16[2048,128], index: 3, kind: input, shape index: {}]
  %s4 = inlined_call_operand.hbm [shape: f32[16,128], index: 4, kind: output, shape index: {}]
  %s5 = sld [smem:[#allocation0]]
  $region42: #{tpu_custom_call.1} parent=0
    _
  %s7 = ssub.s32 1, %s5
  %s8 = scalar_select 0, %s7, %s5
  $region1: #{tpu_custom_call.1} parent=0
    #allocation2 [shape = 'u8[8192]{0}', space=vmem, size = 0x2000, scoped, tag = 'input window, operand 0, single buffered']
    #allocation3 [shape = 's32[1]{0}', space=sflag, size = 0x4, scoped, tag = 'scoped memory for tpu_custom_call.1']
    #allocation4 [shape = 's32[1]{0}', space=sflag, size = 0x4, scoped, tag = 'scoped memory for tpu_custom_call.1']
    #allocation5 [shape = 'u8[131072]{0}', space=vmem, size = 0x20000, scoped, tag = 'input window, operand 1, single buffered']
    #allocation6 [shape = 's32[1]{0}', space=sflag, size = 0x4, scoped, tag = 'scoped memory for tpu_custom_call.1']
    #allocation7 [shape = 'u8[8192]{0}', space=vmem, size = 0x2000, scoped, tag = 'input window, operand 2, single buffered']
    #allocation8 [shape = 'u8[524288]{0}', space=vmem, size = 0x80000, scoped, tag = 'input window, operand 3, single buffered']
    #allocation9 [shape = 's32[1]{0}', space=sflag, size = 0x4, scoped, tag = 'scoped memory for tpu_custom_call.1']
    #allocation10 [shape = 'u8[8192]{0}', space=vmem, size = 0x2000, scoped, tag = 'output window, operand 0, single buffered']
    %9 = vsyncpa [#allocation3], 0
    %10 = vsyncpa [#allocation6], 0
    %11 = vsyncpa [#allocation9], 0
    %12 = vsyncpa [#allocation4], 0
    // Predicated region
    $region2: #{tpu_custom_call.1} parent=1 // pred_check
      _
    $region3: #{tpu_custom_call.1} parent=1 // pred_check_branch
      %14 = sbr.rel (0) target = $region5
    $region4: #{tpu_custom_call.1} parent=1 // pred_region
      %16 = vsyncadd [#allocation3], 0
      %s17 = sshll.u32 %s0, 4
      %s18 = int_to_ptr.hbm [resolvable:$true] %s17
      %s19 = sshll.u32 [#allocation2], 4
      %s20 = int_to_ptr.vmem [resolvable:$true] %s19
      %25 = dma.hbm_to_vmem [thread:$0]  %s18, 256, %s20, [#allocation3], 128, 128, 8
    $region5: #{tpu_custom_call.1} parent=1 // pred_fallthru
      _
    // Predicated region
    $region6: #{tpu_custom_call.1} parent=1 // pred_check
      _
    $region7: #{tpu_custom_call.1} parent=1 // pred_check_branch
      %27 = sbr.rel (0) target = $region9
    $region8: #{tpu_custom_call.1} parent=1 // pred_region
      %29 = vsyncadd [#allocation6], 0
      %s30 = sshll.u32 %s1, 4
      %s31 = int_to_ptr.hbm [resolvable:$true] %s30
      %s32 = sshll.u32 [#allocation5], 4
      %s33 = int_to_ptr.vmem [resolvable:$true] %s32
      %38 = dma.hbm_to_vmem [thread:$0]  %s31, 4096, %s33, [#allocation6], 1024, 1024, 64
    $region9: #{tpu_custom_call.1} parent=1 // pred_fallthru
      _
    // Predicated region
    $region10: #{tpu_custom_call.1} parent=1 // pred_check
      _
    $region11: #{tpu_custom_call.1} parent=1 // pred_check_branch
      %40 = sbr.rel (0) target = $region13
    $region12: #{tpu_custom_call.1} parent=1 // pred_region
      %42 = vsyncadd [#allocation6], 0
      %s44 = sshll.u32 %s2, 4
      %s45 = int_to_ptr.hbm [resolvable:$true] %s44
      %s46 = sshll.u32 [#allocation7], 4
      %s47 = int_to_ptr.vmem [resolvable:$true] %s46
      %49 = dma.hbm_to_vmem [thread:$0]  %s45, 256, %s47, [#allocation6]
    $region13: #{tpu_custom_call.1} parent=1 // pred_fallthru
      _
    // Predicated region
    $region14: #{tpu_custom_call.1} parent=1 // pred_check
      _
    $region15: #{tpu_custom_call.1} parent=1 // pred_check_branch
      %51 = sbr.rel (0) target = $region17
    $region16: #{tpu_custom_call.1} parent=1 // pred_region
      %53 = vsyncadd [#allocation9], 0
      %s54 = sshll.u32 %s3, 4
      %s55 = int_to_ptr.hbm [resolvable:$true] %s54
      %s56 = sshll.u32 [#allocation8], 4
      %s57 = int_to_ptr.vmem [resolvable:$true] %s56
      %62 = dma.hbm_to_vmem [thread:$0]  %s55, 16384, %s57, [#allocation9], 64, 64, 4
    $region17: #{tpu_custom_call.1} parent=1 // pred_fallthru
      _
    // Predicated region
    $region18: #{tpu_custom_call.1} parent=1 // pred_check
      _
    $region19: #{tpu_custom_call.1} parent=1 // pred_check_branch
      %64 = sbr.rel (0) target = $region21
    $region20: #{tpu_custom_call.1} parent=1 // pred_region
      %66 = dma.done [#allocation3], 256
    $region21: #{tpu_custom_call.1} parent=1 // pred_fallthru
      _
    // Predicated region
    $region22: #{tpu_custom_call.1} parent=1 // pred_check
      _
    $region23: #{tpu_custom_call.1} parent=1 // pred_check_branch
      %68 = sbr.rel (0) target = $region25
    $region24: #{tpu_custom_call.1} parent=1 // pred_region
      %70 = dma.done [#allocation6], 4096
    $region25: #{tpu_custom_call.1} parent=1 // pred_fallthru
      _
    // Predicated region
    $region26: #{tpu_custom_call.1} parent=1 // pred_check
      _
    $region27: #{tpu_custom_call.1} parent=1 // pred_check_branch
      %72 = sbr.rel (0) target = $region29
    $region28: #{tpu_custom_call.1} parent=1 // pred_region
      %74 = dma.done [#allocation6], 256
    $region29: #{tpu_custom_call.1} parent=1 // pred_fallthru
      _
    // Predicated region
    $region30: #{tpu_custom_call.1} parent=1 // pred_check
      _
    $region31: #{tpu_custom_call.1} parent=1 // pred_check_branch
      %76 = sbr.rel (0) target = $region33
    $region32: #{tpu_custom_call.1} parent=1 // pred_region
      %78 = dma.done [#allocation9], 16384
    $region33: #{tpu_custom_call.1} parent=1 // pred_fallthru
      _
    %v80 = vld [vmem:[#allocation2] sm:$0xff]
    %v81 = vld [vmem:[#allocation2 + $0x8] sm:$0xff]
    %v82 = vpack.c.bf16 %v81, %v80
    %v83 = vld [vmem:[#allocation5] sm:$0xff]
    %v84 = vld [vmem:[#allocation5 + $0x8] sm:$0xff]
    %v85 = vld [vmem:[#allocation5 + $0x10] sm:$0xff]
    %v86 = vld [vmem:[#allocation5 + $0x18] sm:$0xff]
    %v87 = vld [vmem:[#allocation5 + $0x20] sm:$0xff]
    %v88 = vld [vmem:[#allocation5 + $0x28] sm:$0xff]
    %v89 = vld [vmem:[#allocation5 + $0x30] sm:$0xff]
    %v90 = vld [vmem:[#allocation5 + $0x38] sm:$0xff]
    %v91 = vld [vmem:[#allocation5 + $0x40] sm:$0xff]
    %v92 = vld [vmem:[#allocation5 + $0x48] sm:$0xff]
    %v93 = vld [vmem:[#allocation5 + $0x50] sm:$0xff]
    %v94 = vld [vmem:[#allocation5 + $0x58] sm:$0xff]
    %v95 = vld [vmem:[#allocation5 + $0x60] sm:$0xff]
    %v96 = vld [vmem:[#allocation5 + $0x68] sm:$0xff]
    %v97 = vld [vmem:[#allocation5 + $0x70] sm:$0xff]
    %v98 = vld [vmem:[#allocation5 + $0x78] sm:$0xff]
    %v99 = vld [vmem:[#allocation5 + $0x80] sm:$0xff]
    %v100 = vld [vmem:[#allocation5 + $0x88] sm:$0xff]
    %v101 = vld [vmem:[#allocation5 + $0x90] sm:$0xff]
    %v102 = vld [vmem:[#allocation5 + $0x98] sm:$0xff]
    %v103 = vld [vmem:[#allocation5 + $0xa0] sm:$0xff]
    %v104 = vld [vmem:[#allocation5 + $0xa8] sm:$0xff]
    %v105 = vld [vmem:[#allocation5 + $0xb0] sm:$0xff]
    %v106 = vld [vmem:[#allocation5 + $0xb8] sm:$0xff]
    %v107 = vld [vmem:[#allocation5 + $0xc0] sm:$0xff]
    %v108 = vld [vmem:[#allocation5 + $0xc8] sm:$0xff]
    %v109 = vld [vmem:[#allocation5 + $0xd0] sm:$0xff]
    %v110 = vld [vmem:[#allocation5 + $0xd8] sm:$0xff]
    %v111 = vld [vmem:[#allocation5 + $0xe0] sm:$0xff]
    %v112 = vld [vmem:[#allocation5 + $0xe8] sm:$0xff]
    %v113 = vld [vmem:[#allocation5 + $0xf0] sm:$0xff]
    %v114 = vld [vmem:[#allocation5 + $0xf8] sm:$0xff]
    %v115 = vld [vmem:[#allocation7] sm:$0xff]
    %v116 = vld [vmem:[#allocation7 + $0x8] sm:$0xff]
    %v119 = vperm.slane %v115, 0
    %v120 = vperm.slane %v115, 1
    %v121 = vperm.slane %v115, 2
    %v122 = vperm.slane %v115, 3
    %v123 = vperm.slane %v115, 4
    %v124 = vperm.slane %v115, 5
    %v125 = vperm.slane %v115, 6
    %v126 = vperm.slane %v115, 7
    %v127 = vperm.slane %v116, 0
    %v128 = vperm.slane %v116, 1
    %v129 = vperm.slane %v116, 2
    %v130 = vperm.slane %v116, 3
    %v131 = vperm.slane %v116, 4
    %v132 = vperm.slane %v116, 5
    %v133 = vperm.slane %v116, 6
    %v134 = vperm.slane %v116, 7
    %v183 = vunpack.c.l.b16 %v83
    %v184 = vunpack.c.h.b16 %v83
    %v185 = vunpack.c.l.b16 %v84
    %v186 = vunpack.c.h.b16 %v84
    %v187 = vunpack.c.l.b16 %v85
    %v188 = vunpack.c.h.b16 %v85
    %v189 = vunpack.c.l.b16 %v86
    %v190 = vunpack.c.h.b16 %v86
    %v191 = vunpack.c.l.b16 %v87
    %v192 = vunpack.c.h.b16 %v87
    %v193 = vunpack.c.l.b16 %v88
    %v194 = vunpack.c.h.b16 %v88
    %v195 = vunpack.c.l.b16 %v89
    %v196 = vunpack.c.h.b16 %v89
    %v197 = vunpack.c.l.b16 %v90
    %v198 = vunpack.c.h.b16 %v90
    %v199 = vunpack.c.l.b16 %v91
    %v200 = vunpack.c.h.b16 %v91
    %v201 = vunpack.c.l.b16 %v92
    %v202 = vunpack.c.h.b16 %v92
    %v203 = vunpack.c.l.b16 %v93
    %v204 = vunpack.c.h.b16 %v93
    %v205 = vunpack.c.l.b16 %v94
    %v206 = vunpack.c.h.b16 %v94
    %v207 = vunpack.c.l.b16 %v95
    %v208 = vunpack.c.h.b16 %v95
    %v209 = vunpack.c.l.b16 %v96
    %v210 = vunpack.c.h.b16 %v96
    %v211 = vunpack.c.l.b16 %v97
    %v212 = vunpack.c.h.b16 %v97
    %v213 = vunpack.c.l.b16 %v98
    %v214 = vunpack.c.h.b16 %v98
    %v215 = vunpack.c.l.b16 %v99
    %v216 = vunpack.c.h.b16 %v99
    %v217 = vunpack.c.l.b16 %v100
    %v218 = vunpack.c.h.b16 %v100
    %v219 = vunpack.c.l.b16 %v101
    %v220 = vunpack.c.h.b16 %v101
    %v221 = vunpack.c.l.b16 %v102
    %v222 = vunpack.c.h.b16 %v102
    %v223 = vunpack.c.l.b16 %v103
    %v224 = vunpack.c.h.b16 %v103
    %v225 = vunpack.c.l.b16 %v104
    %v226 = vunpack.c.h.b16 %v104
    %v227 = vunpack.c.l.b16 %v105
    %v228 = vunpack.c.h.b16 %v105
    %v229 = vunpack.c.l.b16 %v106
    %v230 = vunpack.c.h.b16 %v106
    %v231 = vunpack.c.l.b16 %v107
    %v232 = vunpack.c.h.b16 %v107
    %v233 = vunpack.c.l.b16 %v108
    %v234 = vunpack.c.h.b16 %v108
    %v235 = vunpack.c.l.b16 %v109
    %v236 = vunpack.c.h.b16 %v109
    %v237 = vunpack.c.l.b16 %v110
    %v238 = vunpack.c.h.b16 %v110
    %v239 = vunpack.c.l.b16 %v111
    %v240 = vunpack.c.h.b16 %v111
    %v241 = vunpack.c.l.b16 %v112
    %v242 = vunpack.c.h.b16 %v112
    %v243 = vunpack.c.l.b16 %v113
    %v244 = vunpack.c.h.b16 %v113
    %v245 = vunpack.c.l.b16 %v114
    %v246 = vunpack.c.h.b16 %v114
    %v247 = vpack.c.b16 %v199, %v183
    %v248 = vpack.c.b16 %v200, %v184
    %v249 = vpack.c.b16 %v201, %v185
    %v250 = vpack.c.b16 %v202, %v186
    %v251 = vpack.c.b16 %v203, %v187
    %v252 = vpack.c.b16 %v204, %v188
    %v253 = vpack.c.b16 %v205, %v189
    %v254 = vpack.c.b16 %v206, %v190
    %v255 = vpack.c.b16 %v207, %v191
    %v256 = vpack.c.b16 %v208, %v192
    %v257 = vpack.c.b16 %v209, %v193
    %v258 = vpack.c.b16 %v210, %v194
    %v259 = vpack.c.b16 %v211, %v195
    %v260 = vpack.c.b16 %v212, %v196
    %v261 = vpack.c.b16 %v213, %v197
    %v262 = vpack.c.b16 %v214, %v198
    %v263 = vpack.c.b16 %v231, %v215
    %v264 = vpack.c.b16 %v232, %v216
    %v265 = vpack.c.b16 %v233, %v217
    %v266 = vpack.c.b16 %v234, %v218
    %v267 = vpack.c.b16 %v235, %v219
    %v268 = vpack.c.b16 %v236, %v220
    %v269 = vpack.c.b16 %v237, %v221
    %v270 = vpack.c.b16 %v238, %v222
    %v271 = vpack.c.b16 %v239, %v223
    %v272 = vpack.c.b16 %v240, %v224
    %v273 = vpack.c.b16 %v241, %v225
    %v274 = vpack.c.b16 %v242, %v226
    %v275 = vpack.c.b16 %v243, %v227
    %v276 = vpack.c.b16 %v244, %v228
    %v277 = vpack.c.b16 %v245, %v229
    %v278 = vpack.c.b16 %v246, %v230
    %vm311 = vcmask 261120
    %v313 = vsel %vm311, %v82, 0
    %315 = vmatpush.bf16.msra.mxu0 0
    %316 = vmatpush.bf16.msra.mxu0 0
    %317 = vmatpush.bf16.msra.mxu0 0
    %318 = vmatpush.bf16.msra.mxu0 0
    %319 = vmatpush.bf16.msra.mxu0 0
    %320 = vmatpush.bf16.msra.mxu0 0
    %321 = vmatpush.bf16.msra.mxu0 %v263
    %322 = vmatpush.bf16.msra.mxu0 %v247
    %323 = vmatmul.bf16.gmra.mxu0 %v313
    %v324 = vpop.f32.mrf.mxu0
    %v325 = vadd.f32 %v119, %v324
    %v326 = vpop.f32.mrf.mxu0
    %v327 = vadd.f32 %v119, %v326
    %328 = vdwg.mxu0
    %329 = vmatpush.bf16.msra.mxu0 0
    %330 = vmatpush.bf16.msra.mxu0 0
    %331 = vmatpush.bf16.msra.mxu0 0
    %332 = vmatpush.bf16.msra.mxu0 0
    %333 = vmatpush.bf16.msra.mxu0 0
    %334 = vmatpush.bf16.msra.mxu0 0
    %335 = vmatpush.bf16.msra.mxu0 %v264
    %336 = vmatpush.bf16.msra.mxu0 %v248
    %337 = vmatmul.bf16.gmra.mxu0 %v313
    %v338 = vpop.f32.mrf.mxu0
    %v339 = vadd.f32 %v120, %v338
    %v340 = vpop.f32.mrf.mxu0
    %v341 = vadd.f32 %v120, %v340
    %342 = vdwg.mxu0
    %343 = vmatpush.bf16.msra.mxu0 0
    %344 = vmatpush.bf16.msra.mxu0 0
    %345 = vmatpush.bf16.msra.mxu0 0
    %346 = vmatpush.bf16.msra.mxu0 0
    %347 = vmatpush.bf16.msra.mxu0 0
    %348 = vmatpush.bf16.msra.mxu0 0
    %349 = vmatpush.bf16.msra.mxu0 %v265
    %350 = vmatpush.bf16.msra.mxu0 %v249
    %351 = vmatmul.bf16.gmra.mxu0 %v313
    %v352 = vpop.f32.mrf.mxu0
    %v353 = vadd.f32 %v121, %v352
    %v354 = vpop.f32.mrf.mxu0
    %v355 = vadd.f32 %v121, %v354
    %356 = vdwg.mxu0
    %357 = vmatpush.bf16.msra.mxu0 0
    %358 = vmatpush.bf16.msra.mxu0 0
    %359 = vmatpush.bf16.msra.mxu0 0
    %360 = vmatpush.bf16.msra.mxu0 0
    %361 = vmatpush.bf16.msra.mxu0 0
    %362 = vmatpush.bf16.msra.mxu0 0
    %363 = vmatpush.bf16.msra.mxu0 %v266
    %364 = vmatpush.bf16.msra.mxu0 %v250
    %365 = vmatmul.bf16.gmra.mxu0 %v313
    %v366 = vpop.f32.mrf.mxu0
    %v367 = vadd.f32 %v122, %v366
    %v368 = vpop.f32.mrf.mxu0
    %v369 = vadd.f32 %v122, %v368
    %370 = vdwg.mxu0
    %371 = vmatpush.bf16.msra.mxu0 0
    %372 = vmatpush.bf16.msra.mxu0 0
    %373 = vmatpush.bf16.msra.mxu0 0
    %374 = vmatpush.bf16.msra.mxu0 0
    %375 = vmatpush.bf16.msra.mxu0 0
    %376 = vmatpush.bf16.msra.mxu0 0
    %377 = vmatpush.bf16.msra.mxu0 %v267
    %378 = vmatpush.bf16.msra.mxu0 %v251
    %379 = vmatmul.bf16.gmra.mxu0 %v313
    %v380 = vpop.f32.mrf.mxu0
    %v381 = vadd.f32 %v123, %v380
    %v382 = vpop.f32.mrf.mxu0
    %v383 = vadd.f32 %v123, %v382
    %384 = vdwg.mxu0
    %385 = vmatpush.bf16.msra.mxu0 0
    %386 = vmatpush.bf16.msra.mxu0 0
    %387 = vmatpush.bf16.msra.mxu0 0
    %388 = vmatpush.bf16.msra.mxu0 0
    %389 = vmatpush.bf16.msra.mxu0 0
    %390 = vmatpush.bf16.msra.mxu0 0
    %391 = vmatpush.bf16.msra.mxu0 %v268
    %392 = vmatpush.bf16.msra.mxu0 %v252
    %393 = vmatmul.bf16.gmra.mxu0 %v313
    %v394 = vpop.f32.mrf.mxu0
    %v395 = vadd.f32 %v124, %v394
    %v396 = vpop.f32.mrf.mxu0
    %v397 = vadd.f32 %v124, %v396
    %398 = vdwg.mxu0
    %399 = vmatpush.bf16.msra.mxu0 0
    %400 = vmatpush.bf16.msra.mxu0 0
    %401 = vmatpush.bf16.msra.mxu0 0
    %402 = vmatpush.bf16.msra.mxu0 0
    %403 = vmatpush.bf16.msra.mxu0 0
    %404 = vmatpush.bf16.msra.mxu0 0
    %405 = vmatpush.bf16.msra.mxu0 %v269
    %406 = vmatpush.bf16.msra.mxu0 %v253
    %407 = vmatmul.bf16.gmra.mxu0 %v313
    %v408 = vpop.f32.mrf.mxu0
    %v409 = vadd.f32 %v125, %v408
    %v410 = vpop.f32.mrf.mxu0
    %v411 = vadd.f32 %v125, %v410
    %412 = vdwg.mxu0
    %413 = vmatpush.bf16.msra.mxu0 0
    %414 = vmatpush.bf16.msra.mxu0 0
    %415 = vmatpush.bf16.msra.mxu0 0
    %416 = vmatpush.bf16.msra.mxu0 0
    %417 = vmatpush.bf16.msra.mxu0 0
    %418 = vmatpush.bf16.msra.mxu0 0
    %419 = vmatpush.bf16.msra.mxu0 %v270
    %420 = vmatpush.bf16.msra.mxu0 %v254
    %421 = vmatmul.bf16.gmra.mxu0 %v313
    %v422 = vpop.f32.mrf.mxu0
    %v423 = vadd.f32 %v126, %v422
    %v424 = vpop.f32.mrf.mxu0
    %v425 = vadd.f32 %v126, %v424
    %426 = vdwg.mxu0
    %427 = vmatpush.bf16.msra.mxu0 0
    %428 = vmatpush.bf16.msra.mxu0 0
    %429 = vmatpush.bf16.msra.mxu0 0
    %430 = vmatpush.bf16.msra.mxu0 0
    %431 = vmatpush.bf16.msra.mxu0 0
    %432 = vmatpush.bf16.msra.mxu0 0
    %433 = vmatpush.bf16.msra.mxu0 %v271
    %434 = vmatpush.bf16.msra.mxu0 %v255
    %435 = vmatmul.bf16.gmra.mxu0 %v313
    %v436 = vpop.f32.mrf.mxu0
    %v437 = vadd.f32 %v127, %v436
    %v438 = vpop.f32.mrf.mxu0
    %v439 = vadd.f32 %v127, %v438
    %440 = vdwg.mxu0
    %441 = vmatpush.bf16.msra.mxu0 0
    %442 = vmatpush.bf16.msra.mxu0 0
    %443 = vmatpush.bf16.msra.mxu0 0
    %444 = vmatpush.bf16.msra.mxu0 0
    %445 = vmatpush.bf16.msra.mxu0 0
    %446 = vmatpush.bf16.msra.mxu0 0
    %447 = vmatpush.bf16.msra.mxu0 %v272
    %448 = vmatpush.bf16.msra.mxu0 %v256
    %449 = vmatmul.bf16.gmra.mxu0 %v313
    %v450 = vpop.f32.mrf.mxu0
    %v451 = vadd.f32 %v128, %v450
    %v452 = vpop.f32.mrf.mxu0
    %v453 = vadd.f32 %v128, %v452
    %454 = vdwg.mxu0
    %455 = vmatpush.bf16.msra.mxu0 0
    %456 = vmatpush.bf16.msra.mxu0 0
    %457 = vmatpush.bf16.msra.mxu0 0
    %458 = vmatpush.bf16.msra.mxu0 0
    %459 = vmatpush.bf16.msra.mxu0 0
    %460 = vmatpush.bf16.msra.mxu0 0
    %461 = vmatpush.bf16.msra.mxu0 %v273
    %462 = vmatpush.bf16.msra.mxu0 %v257
    %463 = vmatmul.bf16.gmra.mxu0 %v313
    %v464 = vpop.f32.mrf.mxu0
    %v465 = vadd.f32 %v129, %v464
    %v466 = vpop.f32.mrf.mxu0
    %v467 = vadd.f32 %v129, %v466
    %468 = vdwg.mxu0
    %469 = vmatpush.bf16.msra.mxu0 0
    %470 = vmatpush.bf16.msra.mxu0 0
    %471 = vmatpush.bf16.msra.mxu0 0
    %472 = vmatpush.bf16.msra.mxu0 0
    %473 = vmatpush.bf16.msra.mxu0 0
    %474 = vmatpush.bf16.msra.mxu0 0
    %475 = vmatpush.bf16.msra.mxu0 %v274
    %476 = vmatpush.bf16.msra.mxu0 %v258
    %477 = vmatmul.bf16.gmra.mxu0 %v313
    %v478 = vpop.f32.mrf.mxu0
    %v479 = vadd.f32 %v130, %v478
    %v480 = vpop.f32.mrf.mxu0
    %v481 = vadd.f32 %v130, %v480
    %482 = vdwg.mxu0
    %483 = vmatpush.bf16.msra.mxu0 0
    %484 = vmatpush.bf16.msra.mxu0 0
    %485 = vmatpush.bf16.msra.mxu0 0
    %486 = vmatpush.bf16.msra.mxu0 0
    %487 = vmatpush.bf16.msra.mxu0 0
    %488 = vmatpush.bf16.msra.mxu0 0
    %489 = vmatpush.bf16.msra.mxu0 %v275
    %490 = vmatpush.bf16.msra.mxu0 %v259
    %491 = vmatmul.bf16.gmra.mxu0 %v313
    %v492 = vpop.f32.mrf.mxu0
    %v493 = vadd.f32 %v131, %v492
    %v494 = vpop.f32.mrf.mxu0
    %v495 = vadd.f32 %v131, %v494
    %496 = vdwg.mxu0
    %497 = vmatpush.bf16.msra.mxu0 0
    %498 = vmatpush.bf16.msra.mxu0 0
    %499 = vmatpush.bf16.msra.mxu0 0
    %500 = vmatpush.bf16.msra.mxu0 0
    %501 = vmatpush.bf16.msra.mxu0 0
    %502 = vmatpush.bf16.msra.mxu0 0
    %503 = vmatpush.bf16.msra.mxu0 %v276
    %504 = vmatpush.bf16.msra.mxu0 %v260
    %505 = vmatmul.bf16.gmra.mxu0 %v313
    %v506 = vpop.f32.mrf.mxu0
    %v507 = vadd.f32 %v132, %v506
    %v508 = vpop.f32.mrf.mxu0
    %v509 = vadd.f32 %v132, %v508
    %510 = vdwg.mxu0
    %511 = vmatpush.bf16.msra.mxu0 0
    %512 = vmatpush.bf16.msra.mxu0 0
    %513 = vmatpush.bf16.msra.mxu0 0
    %514 = vmatpush.bf16.msra.mxu0 0
    %515 = vmatpush.bf16.msra.mxu0 0
    %516 = vmatpush.bf16.msra.mxu0 0
    %517 = vmatpush.bf16.msra.mxu0 %v277
    %518 = vmatpush.bf16.msra.mxu0 %v261
    %519 = vmatmul.bf16.gmra.mxu0 %v313
    %v520 = vpop.f32.mrf.mxu0
    %v521 = vadd.f32 %v133, %v520
    %v522 = vpop.f32.mrf.mxu0
    %v523 = vadd.f32 %v133, %v522
    %524 = vdwg.mxu0
    %525 = vmatpush.bf16.msra.mxu0 0
    %526 = vmatpush.bf16.msra.mxu0 0
    %527 = vmatpush.bf16.msra.mxu0 0
    %528 = vmatpush.bf16.msra.mxu0 0
    %529 = vmatpush.bf16.msra.mxu0 0
    %530 = vmatpush.bf16.msra.mxu0 0
    %531 = vmatpush.bf16.msra.mxu0 %v278
    %532 = vmatpush.bf16.msra.mxu0 %v262
    %533 = vmatmul.bf16.gmra.mxu0 %v313
    %v534 = vpop.f32.mrf.mxu0
    %v535 = vadd.f32 %v134, %v534
    %v536 = vpop.f32.mrf.mxu0
    %v537 = vadd.f32 %v134, %v536
    %538 = vdwg.mxu0
    %v539 = vmax.f32 %v325, 0.0
    %v540 = vmax.f32 %v339, 0.0
    %v541 = vmax.f32 %v353, 0.0
    %v542 = vmax.f32 %v367, 0.0
    %v543 = vmax.f32 %v381, 0.0
    %v544 = vmax.f32 %v395, 0.0
    %v545 = vmax.f32 %v409, 0.0
    %v546 = vmax.f32 %v423, 0.0
    %v547 = vmax.f32 %v437, 0.0
    %v548 = vmax.f32 %v451, 0.0
    %v549 = vmax.f32 %v465, 0.0
    %v550 = vmax.f32 %v479, 0.0
    %v551 = vmax.f32 %v493, 0.0
    %v552 = vmax.f32 %v507, 0.0
    %v553 = vmax.f32 %v521, 0.0
    %v554 = vmax.f32 %v535, 0.0
    %v555 = vmax.f32 %v327, 0.0
    %v556 = vmax.f32 %v341, 0.0
    %v557 = vmax.f32 %v355, 0.0
    %v558 = vmax.f32 %v369, 0.0
    %v559 = vmax.f32 %v383, 0.0
    %v560 = vmax.f32 %v397, 0.0
    %v561 = vmax.f32 %v411, 0.0
    %v562 = vmax.f32 %v425, 0.0
    %v563 = vmax.f32 %v439, 0.0
    %v564 = vmax.f32 %v453, 0.0
    %v565 = vmax.f32 %v467, 0.0
    %v566 = vmax.f32 %v481, 0.0
    %v567 = vmax.f32 %v495, 0.0
    %v568 = vmax.f32 %v509, 0.0
    %v569 = vmax.f32 %v523, 0.0
    %v570 = vmax.f32 %v537, 0.0
    %v571 = vpack.c.bf16 %v555, %v539
    %v572 = vpack.c.bf16 %v556, %v540
    %v573 = vpack.c.bf16 %v557, %v541
    %v574 = vpack.c.bf16 %v558, %v542
    %v575 = vpack.c.bf16 %v559, %v543
    %v576 = vpack.c.bf16 %v560, %v544
    %v577 = vpack.c.bf16 %v561, %v545
    %v578 = vpack.c.bf16 %v562, %v546
    %v579 = vpack.c.bf16 %v563, %v547
    %v580 = vpack.c.bf16 %v564, %v548
    %v581 = vpack.c.bf16 %v565, %v549
    %v582 = vpack.c.bf16 %v566, %v550
    %v583 = vpack.c.bf16 %v567, %v551
    %v584 = vpack.c.bf16 %v568, %v552
    %v585 = vpack.c.bf16 %v569, %v553
    %v586 = vpack.c.bf16 %v570, %v554
    %v587 = vld [vmem:[#allocation8] sm:$0xf]
    %v588 = vld [vmem:[#allocation8 + $0x4] sm:$0xf]
    %v589 = vld [vmem:[#allocation8 + $0x8] sm:$0xf]
    %v590 = vld [vmem:[#allocation8 + $0xc] sm:$0xf]
    %v591 = vld [vmem:[#allocation8 + $0x10] sm:$0xf]
    %v592 = vld [vmem:[#allocation8 + $0x14] sm:$0xf]
    %v593 = vld [vmem:[#allocation8 + $0x18] sm:$0xf]
    %v594 = vld [vmem:[#allocation8 + $0x1c] sm:$0xf]
    %v595 = vld [vmem:[#allocation8 + $0x20] sm:$0xf]
    %v596 = vld [vmem:[#allocation8 + $0x24] sm:$0xf]
    %v597 = vld [vmem:[#allocation8 + $0x28] sm:$0xf]
    %v598 = vld [vmem:[#allocation8 + $0x2c] sm:$0xf]
    %v599 = vld [vmem:[#allocation8 + $0x30] sm:$0xf]
    %v600 = vld [vmem:[#allocation8 + $0x34] sm:$0xf]
    %v601 = vld [vmem:[#allocation8 + $0x38] sm:$0xf]
    %v602 = vld [vmem:[#allocation8 + $0x3c] sm:$0xf]
    %v603 = vld [vmem:[#allocation8 + $0x40] sm:$0xf]
    %v604 = vld [vmem:[#allocation8 + $0x44] sm:$0xf]
    %v605 = vld [vmem:[#allocation8 + $0x48] sm:$0xf]
    %v606 = vld [vmem:[#allocation8 + $0x4c] sm:$0xf]
    %v607 = vld [vmem:[#allocation8 + $0x50] sm:$0xf]
    %v608 = vld [vmem:[#allocation8 + $0x54] sm:$0xf]
    %v609 = vld [vmem:[#allocation8 + $0x58] sm:$0xf]
    %v610 = vld [vmem:[#allocation8 + $0x5c] sm:$0xf]
    %v611 = vld [vmem:[#allocation8 + $0x60] sm:$0xf]
    %v612 = vld [vmem:[#allocation8 + $0x64] sm:$0xf]
    %v613 = vld [vmem:[#allocation8 + $0x68] sm:$0xf]
    %v614 = vld [vmem:[#allocation8 + $0x6c] sm:$0xf]
    %v615 = vld [vmem:[#allocation8 + $0x70] sm:$0xf]
    %v616 = vld [vmem:[#allocation8 + $0x74] sm:$0xf]
    %v617 = vld [vmem:[#allocation8 + $0x78] sm:$0xf]
    %v618 = vld [vmem:[#allocation8 + $0x7c] sm:$0xf]
    %v619 = vld [vmem:[#allocation8 + $0x80] sm:$0xf]
    %v620 = vld [vmem:[#allocation8 + $0x84] sm:$0xf]
    %v621 = vld [vmem:[#allocation8 + $0x88] sm:$0xf]
    %v622 = vld [vmem:[#allocation8 + $0x8c] sm:$0xf]
    %v623 = vld [vmem:[#allocation8 + $0x90] sm:$0xf]
    %v624 = vld [vmem:[#allocation8 + $0x94] sm:$0xf]
    %v625 = vld [vmem:[#allocation8 + $0x98] sm:$0xf]
    %v626 = vld [vmem:[#allocation8 + $0x9c] sm:$0xf]
    %v627 = vld [vmem:[#allocation8 + $0xa0] sm:$0xf]
    %v628 = vld [vmem:[#allocation8 + $0xa4] sm:$0xf]
    %v629 = vld [vmem:[#allocation8 + $0xa8] sm:$0xf]
    %v630 = vld [vmem:[#allocation8 + $0xac] sm:$0xf]
    %v631 = vld [vmem:[#allocation8 + $0xb0] sm:$0xf]
    %v632 = vld [vmem:[#allocation8 + $0xb4] sm:$0xf]
    %v633 = vld [vmem:[#allocation8 + $0xb8] sm:$0xf]
    %v634 = vld [vmem:[#allocation8 + $0xbc] sm:$0xf]
    %v635 = vld [vmem:[#allocation8 + $0xc0] sm:$0xf]
    %v636 = vld [vmem:[#allocation8 + $0xc4] sm:$0xf]
    %v637 = vld [vmem:[#allocation8 + $0xc8] sm:$0xf]
    %v638 = vld [vmem:[#allocation8 + $0xcc] sm:$0xf]
    %v639 = vld [vmem:[#allocation8 + $0xd0] sm:$0xf]
    %v640 = vld [vmem:[#allocation8 + $0xd4] sm:$0xf]
    %v641 = vld [vmem:[#allocation8 + $0xd8] sm:$0xf]
    %v642 = vld [vmem:[#allocation8 + $0xdc] sm:$0xf]
    %v643 = vld [vmem:[#allocation8 + $0xe0] sm:$0xf]
    %v644 = vld [vmem:[#allocation8 + $0xe4] sm:$0xf]
    %v645 = vld [vmem:[#allocation8 + $0xe8] sm:$0xf]
    %v646 = vld [vmem:[#allocation8 + $0xec] sm:$0xf]
    %v647 = vld [vmem:[#allocation8 + $0xf0] sm:$0xf]
    %v648 = vld [vmem:[#allocation8 + $0xf4] sm:$0xf]
    %v649 = vld [vmem:[#allocation8 + $0xf8] sm:$0xf]
    %v650 = vld [vmem:[#allocation8 + $0xfc] sm:$0xf]
    %v651 = vld [vmem:[#allocation8 + $0x100] sm:$0xf]
    %v652 = vld [vmem:[#allocation8 + $0x104] sm:$0xf]
    %v653 = vld [vmem:[#allocation8 + $0x108] sm:$0xf]
    %v654 = vld [vmem:[#allocation8 + $0x10c] sm:$0xf]
    %v655 = vld [vmem:[#allocation8 + $0x110] sm:$0xf]
    %v656 = vld [vmem:[#allocation8 + $0x114] sm:$0xf]
    %v657 = vld [vmem:[#allocation8 + $0x118] sm:$0xf]
    %v658 = vld [vmem:[#allocation8 + $0x11c] sm:$0xf]
    %v659 = vld [vmem:[#allocation8 + $0x120] sm:$0xf]
    %v660 = vld [vmem:[#allocation8 + $0x124] sm:$0xf]
    %v661 = vld [vmem:[#allocation8 + $0x128] sm:$0xf]
    %v662 = vld [vmem:[#allocation8 + $0x12c] sm:$0xf]
    %v663 = vld [vmem:[#allocation8 + $0x130] sm:$0xf]
    %v664 = vld [vmem:[#allocation8 + $0x134] sm:$0xf]
    %v665 = vld [vmem:[#allocation8 + $0x138] sm:$0xf]
    %v666 = vld [vmem:[#allocation8 + $0x13c] sm:$0xf]
    %v667 = vld [vmem:[#allocation8 + $0x140] sm:$0xf]
    %v668 = vld [vmem:[#allocation8 + $0x144] sm:$0xf]
    %v669 = vld [vmem:[#allocation8 + $0x148] sm:$0xf]
    %v670 = vld [vmem:[#allocation8 + $0x14c] sm:$0xf]
    %v671 = vld [vmem:[#allocation8 + $0x150] sm:$0xf]
    %v672 = vld [vmem:[#allocation8 + $0x154] sm:$0xf]
    %v673 = vld [vmem:[#allocation8 + $0x158] sm:$0xf]
    %v674 = vld [vmem:[#allocation8 + $0x15c] sm:$0xf]
    %v675 = vld [vmem:[#allocation8 + $0x160] sm:$0xf]
    %v676 = vld [vmem:[#allocation8 + $0x164] sm:$0xf]
    %v677 = vld [vmem:[#allocation8 + $0x168] sm:$0xf]
    %v678 = vld [vmem:[#allocation8 + $0x16c] sm:$0xf]
    %v679 = vld [vmem:[#allocation8 + $0x170] sm:$0xf]
    %v680 = vld [vmem:[#allocation8 + $0x174] sm:$0xf]
    %v681 = vld [vmem:[#allocation8 + $0x178] sm:$0xf]
    %v682 = vld [vmem:[#allocation8 + $0x17c] sm:$0xf]
    %v683 = vld [vmem:[#allocation8 + $0x180] sm:$0xf]
    %v684 = vld [vmem:[#allocation8 + $0x184] sm:$0xf]
    %v685 = vld [vmem:[#allocation8 + $0x188] sm:$0xf]
    %v686 = vld [vmem:[#allocation8 + $0x18c] sm:$0xf]
    %v687 = vld [vmem:[#allocation8 + $0x190] sm:$0xf]
    %v688 = vld [vmem:[#allocation8 + $0x194] sm:$0xf]
    %v689 = vld [vmem:[#allocation8 + $0x198] sm:$0xf]
    %v690 = vld [vmem:[#allocation8 + $0x19c] sm:$0xf]
    %v691 = vld [vmem:[#allocation8 + $0x1a0] sm:$0xf]
    %v692 = vld [vmem:[#allocation8 + $0x1a4] sm:$0xf]
    %v693 = vld [vmem:[#allocation8 + $0x1a8] sm:$0xf]
    %v694 = vld [vmem:[#allocation8 + $0x1ac] sm:$0xf]
    %v695 = vld [vmem:[#allocation8 + $0x1b0] sm:$0xf]
    %v696 = vld [vmem:[#allocation8 + $0x1b4] sm:$0xf]
    %v697 = vld [vmem:[#allocation8 + $0x1b8] sm:$0xf]
    %v698 = vld [vmem:[#allocation8 + $0x1bc] sm:$0xf]
    %v699 = vld [vmem:[#allocation8 + $0x1c0] sm:$0xf]
    %v700 = vld [vmem:[#allocation8 + $0x1c4] sm:$0xf]
    %v701 = vld [vmem:[#allocation8 + $0x1c8] sm:$0xf]
    %v702 = vld [vmem:[#allocation8 + $0x1cc] sm:$0xf]
    %v703 = vld [vmem:[#allocation8 + $0x1d0] sm:$0xf]
    %v704 = vld [vmem:[#allocation8 + $0x1d4] sm:$0xf]
    %v705 = vld [vmem:[#allocation8 + $0x1d8] sm:$0xf]
    %v706 = vld [vmem:[#allocation8 + $0x1dc] sm:$0xf]
    %v707 = vld [vmem:[#allocation8 + $0x1e0] sm:$0xf]
    %v708 = vld [vmem:[#allocation8 + $0x1e4] sm:$0xf]
    %v709 = vld [vmem:[#allocation8 + $0x1e8] sm:$0xf]
    %v710 = vld [vmem:[#allocation8 + $0x1ec] sm:$0xf]
    %v711 = vld [vmem:[#allocation8 + $0x1f0] sm:$0xf]
    %v712 = vld [vmem:[#allocation8 + $0x1f4] sm:$0xf]
    %v713 = vld [vmem:[#allocation8 + $0x1f8] sm:$0xf]
    %v714 = vld [vmem:[#allocation8 + $0x1fc] sm:$0xf]
    %v715 = vld [vmem:[#allocation8 + $0x200] sm:$0xf]
    %v716 = vld [vmem:[#allocation8 + $0x204] sm:$0xf]
    %v717 = vld [vmem:[#allocation8 + $0x208] sm:$0xf]
    %v718 = vld [vmem:[#allocation8 + $0x20c] sm:$0xf]
    %v719 = vld [vmem:[#allocation8 + $0x210] sm:$0xf]
    %v720 = vld [vmem:[#allocation8 + $0x214] sm:$0xf]
    %v721 = vld [vmem:[#allocation8 + $0x218] sm:$0xf]
    %v722 = vld [vmem:[#allocation8 + $0x21c] sm:$0xf]
    %v723 = vld [vmem:[#allocation8 + $0x220] sm:$0xf]
    %v724 = vld [vmem:[#allocation8 + $0x224] sm:$0xf]
    %v725 = vld [vmem:[#allocation8 + $0x228] sm:$0xf]
    %v726 = vld [vmem:[#allocation8 + $0x22c] sm:$0xf]
    %v727 = vld [vmem:[#allocation8 + $0x230] sm:$0xf]
    %v728 = vld [vmem:[#allocation8 + $0x234] sm:$0xf]
    %v729 = vld [vmem:[#allocation8 + $0x238] sm:$0xf]
    %v730 = vld [vmem:[#allocation8 + $0x23c] sm:$0xf]
    %v731 = vld [vmem:[#allocation8 + $0x240] sm:$0xf]
    %v732 = vld [vmem:[#allocation8 + $0x244] sm:$0xf]
    %v733 = vld [vmem:[#allocation8 + $0x248] sm:$0xf]
    %v734 = vld [vmem:[#allocation8 + $0x24c] sm:$0xf]
    %v735 = vld [vmem:[#allocation8 + $0x250] sm:$0xf]
    %v736 = vld [vmem:[#allocation8 + $0x254] sm:$0xf]
    %v737 = vld [vmem:[#allocation8 + $0x258] sm:$0xf]
    %v738 = vld [vmem:[#allocation8 + $0x25c] sm:$0xf]
    %v739 = vld [vmem:[#allocation8 + $0x260] sm:$0xf]
    %v740 = vld [vmem:[#allocation8 + $0x264] sm:$0xf]
    %v741 = vld [vmem:[#allocation8 + $0x268] sm:$0xf]
    %v742 = vld [vmem:[#allocation8 + $0x26c] sm:$0xf]
    %v743 = vld [vmem:[#allocation8 + $0x270] sm:$0xf]
    %v744 = vld [vmem:[#allocation8 + $0x274] sm:$0xf]
    %v745 = vld [vmem:[#allocation8 + $0x278] sm:$0xf]
    %v746 = vld [vmem:[#allocation8 + $0x27c] sm:$0xf]
    %v747 = vld [vmem:[#allocation8 + $0x280] sm:$0xf]
    %v748 = vld [vmem:[#allocation8 + $0x284] sm:$0xf]
    %v749 = vld [vmem:[#allocation8 + $0x288] sm:$0xf]
    %v750 = vld [vmem:[#allocation8 + $0x28c] sm:$0xf]
    %v751 = vld [vmem:[#allocation8 + $0x290] sm:$0xf]
    %v752 = vld [vmem:[#allocation8 + $0x294] sm:$0xf]
    %v753 = vld [vmem:[#allocation8 + $0x298] sm:$0xf]
    %v754 = vld [vmem:[#allocation8 + $0x29c] sm:$0xf]
    %v755 = vld [vmem:[#allocation8 + $0x2a0] sm:$0xf]
    %v756 = vld [vmem:[#allocation8 + $0x2a4] sm:$0xf]
    %v757 = vld [vmem:[#allocation8 + $0x2a8] sm:$0xf]
    %v758 = vld [vmem:[#allocation8 + $0x2ac] sm:$0xf]
    %v759 = vld [vmem:[#allocation8 + $0x2b0] sm:$0xf]
    %v760 = vld [vmem:[#allocation8 + $0x2b4] sm:$0xf]
    %v761 = vld [vmem:[#allocation8 + $0x2b8] sm:$0xf]
    %v762 = vld [vmem:[#allocation8 + $0x2bc] sm:$0xf]
    %v763 = vld [vmem:[#allocation8 + $0x2c0] sm:$0xf]
    %v764 = vld [vmem:[#allocation8 + $0x2c4] sm:$0xf]
    %v765 = vld [vmem:[#allocation8 + $0x2c8] sm:$0xf]
    %v766 = vld [vmem:[#allocation8 + $0x2cc] sm:$0xf]
    %v767 = vld [vmem:[#allocation8 + $0x2d0] sm:$0xf]
    %v768 = vld [vmem:[#allocation8 + $0x2d4] sm:$0xf]
    %v769 = vld [vmem:[#allocation8 + $0x2d8] sm:$0xf]
    %v770 = vld [vmem:[#allocation8 + $0x2dc] sm:$0xf]
    %v771 = vld [vmem:[#allocation8 + $0x2e0] sm:$0xf]
    %v772 = vld [vmem:[#allocation8 + $0x2e4] sm:$0xf]
    %v773 = vld [vmem:[#allocation8 + $0x2e8] sm:$0xf]
    %v774 = vld [vmem:[#allocation8 + $0x2ec] sm:$0xf]
    %v775 = vld [vmem:[#allocation8 + $0x2f0] sm:$0xf]
    %v776 = vld [vmem:[#allocation8 + $0x2f4] sm:$0xf]
    %v777 = vld [vmem:[#allocation8 + $0x2f8] sm:$0xf]
    %v778 = vld [vmem:[#allocation8 + $0x2fc] sm:$0xf]
    %v779 = vld [vmem:[#allocation8 + $0x300] sm:$0xf]
    %v780 = vld [vmem:[#allocation8 + $0x304] sm:$0xf]
    %v781 = vld [vmem:[#allocation8 + $0x308] sm:$0xf]
    %v782 = vld [vmem:[#allocation8 + $0x30c] sm:$0xf]
    %v783 = vld [vmem:[#allocation8 + $0x310] sm:$0xf]
    %v784 = vld [vmem:[#allocation8 + $0x314] sm:$0xf]
    %v785 = vld [vmem:[#allocation8 + $0x318] sm:$0xf]
    %v786 = vld [vmem:[#allocation8 + $0x31c] sm:$0xf]
    %v787 = vld [vmem:[#allocation8 + $0x320] sm:$0xf]
    %v788 = vld [vmem:[#allocation8 + $0x324] sm:$0xf]
    %v789 = vld [vmem:[#allocation8 + $0x328] sm:$0xf]
    %v790 = vld [vmem:[#allocation8 + $0x32c] sm:$0xf]
    %v791 = vld [vmem:[#allocation8 + $0x330] sm:$0xf]
    %v792 = vld [vmem:[#allocation8 + $0x334] sm:$0xf]
    %v793 = vld [vmem:[#allocation8 + $0x338] sm:$0xf]
    %v794 = vld [vmem:[#allocation8 + $0x33c] sm:$0xf]
    %v795 = vld [vmem:[#allocation8 + $0x340] sm:$0xf]
    %v796 = vld [vmem:[#allocation8 + $0x344] sm:$0xf]
    %v797 = vld [vmem:[#allocation8 + $0x348] sm:$0xf]
    %v798 = vld [vmem:[#allocation8 + $0x34c] sm:$0xf]
    %v799 = vld [vmem:[#allocation8 + $0x350] sm:$0xf]
    %v800 = vld [vmem:[#allocation8 + $0x354] sm:$0xf]
    %v801 = vld [vmem:[#allocation8 + $0x358] sm:$0xf]
    %v802 = vld [vmem:[#allocation8 + $0x35c] sm:$0xf]
    %v803 = vld [vmem:[#allocation8 + $0x360] sm:$0xf]
    %v804 = vld [vmem:[#allocation8 + $0x364] sm:$0xf]
    %v805 = vld [vmem:[#allocation8 + $0x368] sm:$0xf]
    %v806 = vld [vmem:[#allocation8 + $0x36c] sm:$0xf]
    %v807 = vld [vmem:[#allocation8 + $0x370] sm:$0xf]
    %v808 = vld [vmem:[#allocation8 + $0x374] sm:$0xf]
    %v809 = vld [vmem:[#allocation8 + $0x378] sm:$0xf]
    %v810 = vld [vmem:[#allocation8 + $0x37c] sm:$0xf]
    %v811 = vld [vmem:[#allocation8 + $0x380] sm:$0xf]
    %v812 = vld [vmem:[#allocation8 + $0x384] sm:$0xf]
    %v813 = vld [vmem:[#allocation8 + $0x388] sm:$0xf]
    %v814 = vld [vmem:[#allocation8 + $0x38c] sm:$0xf]
    %v815 = vld [vmem:[#allocation8 + $0x390] sm:$0xf]
    %v816 = vld [vmem:[#allocation8 + $0x394] sm:$0xf]
    %v817 = vld [vmem:[#allocation8 + $0x398] sm:$0xf]
    %v818 = vld [vmem:[#allocation8 + $0x39c] sm:$0xf]
    %v819 = vld [vmem:[#allocation8 + $0x3a0] sm:$0xf]
    %v820 = vld [vmem:[#allocation8 + $0x3a4] sm:$0xf]
    %v821 = vld [vmem:[#allocation8 + $0x3a8] sm:$0xf]
    %v822 = vld [vmem:[#allocation8 + $0x3ac] sm:$0xf]
    %v823 = vld [vmem:[#allocation8 + $0x3b0] sm:$0xf]
    %v824 = vld [vmem:[#allocation8 + $0x3b4] sm:$0xf]
    %v825 = vld [vmem:[#allocation8 + $0x3b8] sm:$0xf]
    %v826 = vld [vmem:[#allocation8 + $0x3bc] sm:$0xf]
    %v827 = vld [vmem:[#allocation8 + $0x3c0] sm:$0xf]
    %v828 = vld [vmem:[#allocation8 + $0x3c4] sm:$0xf]
    %v829 = vld [vmem:[#allocation8 + $0x3c8] sm:$0xf]
    %v830 = vld [vmem:[#allocation8 + $0x3cc] sm:$0xf]
    %v831 = vld [vmem:[#allocation8 + $0x3d0] sm:$0xf]
    %v832 = vld [vmem:[#allocation8 + $0x3d4] sm:$0xf]
    %v833 = vld [vmem:[#allocation8 + $0x3d8] sm:$0xf]
    %v834 = vld [vmem:[#allocation8 + $0x3dc] sm:$0xf]
    %v835 = vld [vmem:[#allocation8 + $0x3e0] sm:$0xf]
    %v836 = vld [vmem:[#allocation8 + $0x3e4] sm:$0xf]
    %v837 = vld [vmem:[#allocation8 + $0x3e8] sm:$0xf]
    %v838 = vld [vmem:[#allocation8 + $0x3ec] sm:$0xf]
    %v839 = vld [vmem:[#allocation8 + $0x3f0] sm:$0xf]
    %v840 = vld [vmem:[#allocation8 + $0x3f4] sm:$0xf]
    %v841 = vld [vmem:[#allocation8 + $0x3f8] sm:$0xf]
    %v842 = vld [vmem:[#allocation8 + $0x3fc] sm:$0xf]
    %v1099 = vunpack.c.l.b16 %v587
    %v1100 = vunpack.c.l.b16 %v588
    %v1101 = vunpack.c.l.b16 %v589
    %v1102 = vunpack.c.l.b16 %v590
    %v1103 = vunpack.c.l.b16 %v591
    %v1104 = vunpack.c.l.b16 %v592
    %v1105 = vunpack.c.l.b16 %v593
    %v1106 = vunpack.c.l.b16 %v594
    %v1107 = vunpack.c.l.b16 %v595
    %v1108 = vunpack.c.l.b16 %v596
    %v1109 = vunpack.c.l.b16 %v597
    %v1110 = vunpack.c.l.b16 %v598
    %v1111 = vunpack.c.l.b16 %v599
    %v1112 = vunpack.c.l.b16 %v600
    %v1113 = vunpack.c.l.b16 %v601
    %v1114 = vunpack.c.l.b16 %v602
    %v1115 = vunpack.c.l.b16 %v603
    %v1116 = vunpack.c.l.b16 %v604
    %v1117 = vunpack.c.l.b16 %v605
    %v1118 = vunpack.c.l.b16 %v606
    %v1119 = vunpack.c.l.b16 %v607
    %v1120 = vunpack.c.l.b16 %v608
    %v1121 = vunpack.c.l.b16 %v609
    %v1122 = vunpack.c.l.b16 %v610
    %v1123 = vunpack.c.l.b16 %v611
    %v1124 = vunpack.c.l.b16 %v612
    %v1125 = vunpack.c.l.b16 %v613
    %v1126 = vunpack.c.l.b16 %v614
    %v1127 = vunpack.c.l.b16 %v615
    %v1128 = vunpack.c.l.b16 %v616
    %v1129 = vunpack.c.l.b16 %v617
    %v1130 = vunpack.c.l.b16 %v618
    %v1131 = vunpack.c.l.b16 %v619
    %v1132 = vunpack.c.l.b16 %v620
    %v1133 = vunpack.c.l.b16 %v621
    %v1134 = vunpack.c.l.b16 %v622
    %v1135 = vunpack.c.l.b16 %v623
    %v1136 = vunpack.c.l.b16 %v624
    %v1137 = vunpack.c.l.b16 %v625
    %v1138 = vunpack.c.l.b16 %v626
    %v1139 = vunpack.c.l.b16 %v627
    %v1140 = vunpack.c.l.b16 %v628
    %v1141 = vunpack.c.l.b16 %v629
    %v1142 = vunpack.c.l.b16 %v630
    %v1143 = vunpack.c.l.b16 %v631
    %v1144 = vunpack.c.l.b16 %v632
    %v1145 = vunpack.c.l.b16 %v633
    %v1146 = vunpack.c.l.b16 %v634
    %v1147 = vunpack.c.l.b16 %v635
    %v1148 = vunpack.c.l.b16 %v636
    %v1149 = vunpack.c.l.b16 %v637
    %v1150 = vunpack.c.l.b16 %v638
    %v1151 = vunpack.c.l.b16 %v639
    %v1152 = vunpack.c.l.b16 %v640
    %v1153 = vunpack.c.l.b16 %v641
    %v1154 = vunpack.c.l.b16 %v642
    %v1155 = vunpack.c.l.b16 %v643
    %v1156 = vunpack.c.l.b16 %v644
    %v1157 = vunpack.c.l.b16 %v645
    %v1158 = vunpack.c.l.b16 %v646
    %v1159 = vunpack.c.l.b16 %v647
    %v1160 = vunpack.c.l.b16 %v648
    %v1161 = vunpack.c.l.b16 %v649
    %v1162 = vunpack.c.l.b16 %v650
    %v1163 = vunpack.c.l.b16 %v651
    %v1164 = vunpack.c.l.b16 %v652
    %v1165 = vunpack.c.l.b16 %v653
    %v1166 = vunpack.c.l.b16 %v654
    %v1167 = vunpack.c.l.b16 %v655
    %v1168 = vunpack.c.l.b16 %v656
    %v1169 = vunpack.c.l.b16 %v657
    %v1170 = vunpack.c.l.b16 %v658
    %v1171 = vunpack.c.l.b16 %v659
    %v1172 = vunpack.c.l.b16 %v660
    %v1173 = vunpack.c.l.b16 %v661
    %v1174 = vunpack.c.l.b16 %v662
    %v1175 = vunpack.c.l.b16 %v663
    %v1176 = vunpack.c.l.b16 %v664
    %v1177 = vunpack.c.l.b16 %v665
    %v1178 = vunpack.c.l.b16 %v666
    %v1179 = vunpack.c.l.b16 %v667
    %v1180 = vunpack.c.l.b16 %v668
    %v1181 = vunpack.c.l.b16 %v669
    %v1182 = vunpack.c.l.b16 %v670
    %v1183 = vunpack.c.l.b16 %v671
    %v1184 = vunpack.c.l.b16 %v672
    %v1185 = vunpack.c.l.b16 %v673
    %v1186 = vunpack.c.l.b16 %v674
    %v1187 = vunpack.c.l.b16 %v675
    %v1188 = vunpack.c.l.b16 %v676
    %v1189 = vunpack.c.l.b16 %v677
    %v1190 = vunpack.c.l.b16 %v678
    %v1191 = vunpack.c.l.b16 %v679
    %v1192 = vunpack.c.l.b16 %v680
    %v1193 = vunpack.c.l.b16 %v681
    %v1194 = vunpack.c.l.b16 %v682
    %v1195 = vunpack.c.l.b16 %v683
    %v1196 = vunpack.c.l.b16 %v684
    %v1197 = vunpack.c.l.b16 %v685
    %v1198 = vunpack.c.l.b16 %v686
    %v1199 = vunpack.c.l.b16 %v687
    %v1200 = vunpack.c.l.b16 %v688
    %v1201 = vunpack.c.l.b16 %v689
    %v1202 = vunpack.c.l.b16 %v690
    %v1203 = vunpack.c.l.b16 %v691
    %v1204 = vunpack.c.l.b16 %v692
    %v1205 = vunpack.c.l.b16 %v693
    %v1206 = vunpack.c.l.b16 %v694
    %v1207 = vunpack.c.l.b16 %v695
    %v1208 = vunpack.c.l.b16 %v696
    %v1209 = vunpack.c.l.b16 %v697
    %v1210 = vunpack.c.l.b16 %v698
    %v1211 = vunpack.c.l.b16 %v699
    %v1212 = vunpack.c.l.b16 %v700
    %v1213 = vunpack.c.l.b16 %v701
    %v1214 = vunpack.c.l.b16 %v702
    %v1215 = vunpack.c.l.b16 %v703
    %v1216 = vunpack.c.l.b16 %v704
    %v1217 = vunpack.c.l.b16 %v705
    %v1218 = vunpack.c.l.b16 %v706
    %v1219 = vunpack.c.l.b16 %v707
    %v1220 = vunpack.c.l.b16 %v708
    %v1221 = vunpack.c.l.b16 %v709
    %v1222 = vunpack.c.l.b16 %v710
    %v1223 = vunpack.c.l.b16 %v711
    %v1224 = vunpack.c.l.b16 %v712
    %v1225 = vunpack.c.l.b16 %v713
    %v1226 = vunpack.c.l.b16 %v714
    %v1227 = vunpack.c.l.b16 %v715
    %v1228 = vunpack.c.l.b16 %v716
    %v1229 = vunpack.c.l.b16 %v717
    %v1230 = vunpack.c.l.b16 %v718
    %v1231 = vunpack.c.l.b16 %v719
    %v1232 = vunpack.c.l.b16 %v720
    %v1233 = vunpack.c.l.b16 %v721
    %v1234 = vunpack.c.l.b16 %v722
    %v1235 = vunpack.c.l.b16 %v723
    %v1236 = vunpack.c.l.b16 %v724
    %v1237 = vunpack.c.l.b16 %v725
    %v1238 = vunpack.c.l.b16 %v726
    %v1239 = vunpack.c.l.b16 %v727
    %v1240 = vunpack.c.l.b16 %v728
    %v1241 = vunpack.c.l.b16 %v729
    %v1242 = vunpack.c.l.b16 %v730
    %v1243 = vunpack.c.l.b16 %v731
    %v1244 = vunpack.c.l.b16 %v732
    %v1245 = vunpack.c.l.b16 %v733
    %v1246 = vunpack.c.l.b16 %v734
    %v1247 = vunpack.c.l.b16 %v735
    %v1248 = vunpack.c.l.b16 %v736
    %v1249 = vunpack.c.l.b16 %v737
    %v1250 = vunpack.c.l.b16 %v738
    %v1251 = vunpack.c.l.b16 %v739
    %v1252 = vunpack.c.l.b16 %v740
    %v1253 = vunpack.c.l.b16 %v741
    %v1254 = vunpack.c.l.b16 %v742
    %v1255 = vunpack.c.l.b16 %v743
    %v1256 = vunpack.c.l.b16 %v744
    %v1257 = vunpack.c.l.b16 %v745
    %v1258 = vunpack.c.l.b16 %v746
    %v1259 = vunpack.c.l.b16 %v747
    %v1260 = vunpack.c.l.b16 %v748
    %v1261 = vunpack.c.l.b16 %v749
    %v1262 = vunpack.c.l.b16 %v750
    %v1263 = vunpack.c.l.b16 %v751
    %v1264 = vunpack.c.l.b16 %v752
    %v1265 = vunpack.c.l.b16 %v753
    %v1266 = vunpack.c.l.b16 %v754
    %v1267 = vunpack.c.l.b16 %v755
    %v1268 = vunpack.c.l.b16 %v756
    %v1269 = vunpack.c.l.b16 %v757
    %v1270 = vunpack.c.l.b16 %v758
    %v1271 = vunpack.c.l.b16 %v759
    %v1272 = vunpack.c.l.b16 %v760
    %v1273 = vunpack.c.l.b16 %v761
    %v1274 = vunpack.c.l.b16 %v762
    %v1275 = vunpack.c.l.b16 %v763
    %v1276 = vunpack.c.l.b16 %v764
    %v1277 = vunpack.c.l.b16 %v765
    %v1278 = vunpack.c.l.b16 %v766
    %v1279 = vunpack.c.l.b16 %v767
    %v1280 = vunpack.c.l.b16 %v768
    %v1281 = vunpack.c.l.b16 %v769
    %v1282 = vunpack.c.l.b16 %v770
    %v1283 = vunpack.c.l.b16 %v771
    %v1284 = vunpack.c.l.b16 %v772
    %v1285 = vunpack.c.l.b16 %v773
    %v1286 = vunpack.c.l.b16 %v774
    %v1287 = vunpack.c.l.b16 %v775
    %v1288 = vunpack.c.l.b16 %v776
    %v1289 = vunpack.c.l.b16 %v777
    %v1290 = vunpack.c.l.b16 %v778
    %v1291 = vunpack.c.l.b16 %v779
    %v1292 = vunpack.c.l.b16 %v780
    %v1293 = vunpack.c.l.b16 %v781
    %v1294 = vunpack.c.l.b16 %v782
    %v1295 = vunpack.c.l.b16 %v783
    %v1296 = vunpack.c.l.b16 %v784
    %v1297 = vunpack.c.l.b16 %v785
    %v1298 = vunpack.c.l.b16 %v786
    %v1299 = vunpack.c.l.b16 %v787
    %v1300 = vunpack.c.l.b16 %v788
    %v1301 = vunpack.c.l.b16 %v789
    %v1302 = vunpack.c.l.b16 %v790
    %v1303 = vunpack.c.l.b16 %v791
    %v1304 = vunpack.c.l.b16 %v792
    %v1305 = vunpack.c.l.b16 %v793
    %v1306 = vunpack.c.l.b16 %v794
    %v1307 = vunpack.c.l.b16 %v795
    %v1308 = vunpack.c.l.b16 %v796
    %v1309 = vunpack.c.l.b16 %v797
    %v1310 = vunpack.c.l.b16 %v798
    %v1311 = vunpack.c.l.b16 %v799
    %v1312 = vunpack.c.l.b16 %v800
    %v1313 = vunpack.c.l.b16 %v801
    %v1314 = vunpack.c.l.b16 %v802
    %v1315 = vunpack.c.l.b16 %v803
    %v1316 = vunpack.c.l.b16 %v804
    %v1317 = vunpack.c.l.b16 %v805
    %v1318 = vunpack.c.l.b16 %v806
    %v1319 = vunpack.c.l.b16 %v807
    %v1320 = vunpack.c.l.b16 %v808
    %v1321 = vunpack.c.l.b16 %v809
    %v1322 = vunpack.c.l.b16 %v810
    %v1323 = vunpack.c.l.b16 %v811
    %v1324 = vunpack.c.l.b16 %v812
    %v1325 = vunpack.c.l.b16 %v813
    %v1326 = vunpack.c.l.b16 %v814
    %v1327 = vunpack.c.l.b16 %v815
    %v1328 = vunpack.c.l.b16 %v816
    %v1329 = vunpack.c.l.b16 %v817
    %v1330 = vunpack.c.l.b16 %v818
    %v1331 = vunpack.c.l.b16 %v819
    %v1332 = vunpack.c.l.b16 %v820
    %v1333 = vunpack.c.l.b16 %v821
    %v1334 = vunpack.c.l.b16 %v822
    %v1335 = vunpack.c.l.b16 %v823
    %v1336 = vunpack.c.l.b16 %v824
    %v1337 = vunpack.c.l.b16 %v825
    %v1338 = vunpack.c.l.b16 %v826
    %v1339 = vunpack.c.l.b16 %v827
    %v1340 = vunpack.c.l.b16 %v828
    %v1341 = vunpack.c.l.b16 %v829
    %v1342 = vunpack.c.l.b16 %v830
    %v1343 = vunpack.c.l.b16 %v831
    %v1344 = vunpack.c.l.b16 %v832
    %v1345 = vunpack.c.l.b16 %v833
    %v1346 = vunpack.c.l.b16 %v834
    %v1347 = vunpack.c.l.b16 %v835
    %v1348 = vunpack.c.l.b16 %v836
    %v1349 = vunpack.c.l.b16 %v837
    %v1350 = vunpack.c.l.b16 %v838
    %v1351 = vunpack.c.l.b16 %v839
    %v1352 = vunpack.c.l.b16 %v840
    %v1353 = vunpack.c.l.b16 %v841
    %v1354 = vunpack.c.l.b16 %v842
    %v1355 = vpack.c.b16 %v1100, %v1099
    %v1356 = vpack.c.b16 %v1102, %v1101
    %v1357 = vpack.c.b16 %v1104, %v1103
    %v1358 = vpack.c.b16 %v1106, %v1105
    %v1359 = vpack.c.b16 %v1108, %v1107
    %v1360 = vpack.c.b16 %v1110, %v1109
    %v1361 = vpack.c.b16 %v1112, %v1111
    %v1362 = vpack.c.b16 %v1114, %v1113
    %v1363 = vpack.c.b16 %v1116, %v1115
    %v1364 = vpack.c.b16 %v1118, %v1117
    %v1365 = vpack.c.b16 %v1120, %v1119
    %v1366 = vpack.c.b16 %v1122, %v1121
    %v1367 = vpack.c.b16 %v1124, %v1123
    %v1368 = vpack.c.b16 %v1126, %v1125
    %v1369 = vpack.c.b16 %v1128, %v1127
    %v1370 = vpack.c.b16 %v1130, %v1129
    %v1371 = vpack.c.b16 %v1132, %v1131
    %v1372 = vpack.c.b16 %v1134, %v1133
    %v1373 = vpack.c.b16 %v1136, %v1135
    %v1374 = vpack.c.b16 %v1138, %v1137
    %v1375 = vpack.c.b16 %v1140, %v1139
    %v1376 = vpack.c.b16 %v1142, %v1141
    %v1377 = vpack.c.b16 %v1144, %v1143
    %v1378 = vpack.c.b16 %v1146, %v1145
    %v1379 = vpack.c.b16 %v1148, %v1147
    %v1380 = vpack.c.b16 %v1150, %v1149
    %v1381 = vpack.c.b16 %v1152, %v1151
    %v1382 = vpack.c.b16 %v1154, %v1153
    %v1383 = vpack.c.b16 %v1156, %v1155
    %v1384 = vpack.c.b16 %v1158, %v1157
    %v1385 = vpack.c.b16 %v1160, %v1159
    %v1386 = vpack.c.b16 %v1162, %v1161
    %v1387 = vpack.c.b16 %v1164, %v1163
    %v1388 = vpack.c.b16 %v1166, %v1165
    %v1389 = vpack.c.b16 %v1168, %v1167
    %v1390 = vpack.c.b16 %v1170, %v1169
    %v1391 = vpack.c.b16 %v1172, %v1171
    %v1392 = vpack.c.b16 %v1174, %v1173
    %v1393 = vpack.c.b16 %v1176, %v1175
    %v1394 = vpack.c.b16 %v1178, %v1177
    %v1395 = vpack.c.b16 %v1180, %v1179
    %v1396 = vpack.c.b16 %v1182, %v1181
    %v1397 = vpack.c.b16 %v1184, %v1183
    %v1398 = vpack.c.b16 %v1186, %v1185
    %v1399 = vpack.c.b16 %v1188, %v1187
    %v1400 = vpack.c.b16 %v1190, %v1189
    %v1401 = vpack.c.b16 %v1192, %v1191
    %v1402 = vpack.c.b16 %v1194, %v1193
    %v1403 = vpack.c.b16 %v1196, %v1195
    %v1404 = vpack.c.b16 %v1198, %v1197
    %v1405 = vpack.c.b16 %v1200, %v1199
    %v1406 = vpack.c.b16 %v1202, %v1201
    %v1407 = vpack.c.b16 %v1204, %v1203
    %v1408 = vpack.c.b16 %v1206, %v1205
    %v1409 = vpack.c.b16 %v1208, %v1207
    %v1410 = vpack.c.b16 %v1210, %v1209
    %v1411 = vpack.c.b16 %v1212, %v1211
    %v1412 = vpack.c.b16 %v1214, %v1213
    %v1413 = vpack.c.b16 %v1216, %v1215
    %v1414 = vpack.c.b16 %v1218, %v1217
    %v1415 = vpack.c.b16 %v1220, %v1219
    %v1416 = vpack.c.b16 %v1222, %v1221
    %v1417 = vpack.c.b16 %v1224, %v1223
    %v1418 = vpack.c.b16 %v1226, %v1225
    %v1419 = vpack.c.b16 %v1228, %v1227
    %v1420 = vpack.c.b16 %v1230, %v1229
    %v1421 = vpack.c.b16 %v1232, %v1231
    %v1422 = vpack.c.b16 %v1234, %v1233
    %v1423 = vpack.c.b16 %v1236, %v1235
    %v1424 = vpack.c.b16 %v1238, %v1237
    %v1425 = vpack.c.b16 %v1240, %v1239
    %v1426 = vpack.c.b16 %v1242, %v1241
    %v1427 = vpack.c.b16 %v1244, %v1243
    %v1428 = vpack.c.b16 %v1246, %v1245
    %v1429 = vpack.c.b16 %v1248, %v1247
    %v1430 = vpack.c.b16 %v1250, %v1249
    %v1431 = vpack.c.b16 %v1252, %v1251
    %v1432 = vpack.c.b16 %v1254, %v1253
    %v1433 = vpack.c.b16 %v1256, %v1255
    %v1434 = vpack.c.b16 %v1258, %v1257
    %v1435 = vpack.c.b16 %v1260, %v1259
    %v1436 = vpack.c.b16 %v1262, %v1261
    %v1437 = vpack.c.b16 %v1264, %v1263
    %v1438 = vpack.c.b16 %v1266, %v1265
    %v1439 = vpack.c.b16 %v1268, %v1267
    %v1440 = vpack.c.b16 %v1270, %v1269
    %v1441 = vpack.c.b16 %v1272, %v1271
    %v1442 = vpack.c.b16 %v1274, %v1273
    %v1443 = vpack.c.b16 %v1276, %v1275
    %v1444 = vpack.c.b16 %v1278, %v1277
    %v1445 = vpack.c.b16 %v1280, %v1279
    %v1446 = vpack.c.b16 %v1282, %v1281
    %v1447 = vpack.c.b16 %v1284, %v1283
    %v1448 = vpack.c.b16 %v1286, %v1285
    %v1449 = vpack.c.b16 %v1288, %v1287
    %v1450 = vpack.c.b16 %v1290, %v1289
    %v1451 = vpack.c.b16 %v1292, %v1291
    %v1452 = vpack.c.b16 %v1294, %v1293
    %v1453 = vpack.c.b16 %v1296, %v1295
    %v1454 = vpack.c.b16 %v1298, %v1297
    %v1455 = vpack.c.b16 %v1300, %v1299
    %v1456 = vpack.c.b16 %v1302, %v1301
    %v1457 = vpack.c.b16 %v1304, %v1303
    %v1458 = vpack.c.b16 %v1306, %v1305
    %v1459 = vpack.c.b16 %v1308, %v1307
    %v1460 = vpack.c.b16 %v1310, %v1309
    %v1461 = vpack.c.b16 %v1312, %v1311
    %v1462 = vpack.c.b16 %v1314, %v1313
    %v1463 = vpack.c.b16 %v1316, %v1315
    %v1464 = vpack.c.b16 %v1318, %v1317
    %v1465 = vpack.c.b16 %v1320, %v1319
    %v1466 = vpack.c.b16 %v1322, %v1321
    %v1467 = vpack.c.b16 %v1324, %v1323
    %v1468 = vpack.c.b16 %v1326, %v1325
    %v1469 = vpack.c.b16 %v1328, %v1327
    %v1470 = vpack.c.b16 %v1330, %v1329
    %v1471 = vpack.c.b16 %v1332, %v1331
    %v1472 = vpack.c.b16 %v1334, %v1333
    %v1473 = vpack.c.b16 %v1336, %v1335
    %v1474 = vpack.c.b16 %v1338, %v1337
    %v1475 = vpack.c.b16 %v1340, %v1339
    %v1476 = vpack.c.b16 %v1342, %v1341
    %v1477 = vpack.c.b16 %v1344, %v1343
    %v1478 = vpack.c.b16 %v1346, %v1345
    %v1479 = vpack.c.b16 %v1348, %v1347
    %v1480 = vpack.c.b16 %v1350, %v1349
    %v1481 = vpack.c.b16 %v1352, %v1351
    %v1482 = vpack.c.b16 %v1354, %v1353
    %1611 = vmatpush.bf16.msra.mxu0 %v1362
    %1612 = vmatpush.bf16.msra.mxu0 %v1361
    %1613 = vmatpush.bf16.msra.mxu0 %v1360
    %1614 = vmatpush.bf16.msra.mxu0 %v1359
    %1615 = vmatpush.bf16.msra.mxu0 %v1358
    %1616 = vmatpush.bf16.msra.mxu0 %v1357
    %1617 = vmatpush.bf16.msra.mxu0 %v1356
    %1618 = vmatpush.bf16.msra.mxu0 %v1355
    %1619 = vmatmul.bf16.gmra.mxu0 %v571
    %v1620 = vpop.f32.mrf.mxu0
    %v1621 = vadd.f32 -0.08770857, %v1620
    %v1622 = vpop.f32.mrf.mxu0
    %v1623 = vadd.f32 -0.08770857, %v1622
    %1624 = vdwg.mxu0
    %1625 = vmatpush.bf16.msra.mxu0 %v1370
    %1626 = vmatpush.bf16.msra.mxu0 %v1369
    %1627 = vmatpush.bf16.msra.mxu0 %v1368
    %1628 = vmatpush.bf16.msra.mxu0 %v1367
    %1629 = vmatpush.bf16.msra.mxu0 %v1366
    %1630 = vmatpush.bf16.msra.mxu0 %v1365
    %1631 = vmatpush.bf16.msra.mxu0 %v1364
    %1632 = vmatpush.bf16.msra.mxu0 %v1363
    %1633 = vmatmul.bf16.gmra.mxu0 %v572
    %v1634 = vpop.f32.mrf.mxu0
    %v1635 = vadd.f32 %v1621, %v1634
    %v1636 = vpop.f32.mrf.mxu0
    %v1637 = vadd.f32 %v1623, %v1636
    %1638 = vdwg.mxu0
    %1639 = vmatpush.bf16.msra.mxu0 %v1378
    %1640 = vmatpush.bf16.msra.mxu0 %v1377
    %1641 = vmatpush.bf16.msra.mxu0 %v1376
    %1642 = vmatpush.bf16.msra.mxu0 %v1375
    %1643 = vmatpush.bf16.msra.mxu0 %v1374
    %1644 = vmatpush.bf16.msra.mxu0 %v1373
    %1645 = vmatpush.bf16.msra.mxu0 %v1372
    %1646 = vmatpush.bf16.msra.mxu0 %v1371
    %1647 = vmatmul.bf16.gmra.mxu0 %v573
    %v1648 = vpop.f32.mrf.mxu0
    %v1649 = vadd.f32 %v1635, %v1648
    %v1650 = vpop.f32.mrf.mxu0
    %v1651 = vadd.f32 %v1637, %v1650
    %1652 = vdwg.mxu0
    %1653 = vmatpush.bf16.msra.mxu0 %v1386
    %1654 = vmatpush.bf16.msra.mxu0 %v1385
    %1655 = vmatpush.bf16.msra.mxu0 %v1384
    %1656 = vmatpush.bf16.msra.mxu0 %v1383
    %1657 = vmatpush.bf16.msra.mxu0 %v1382
    %1658 = vmatpush.bf16.msra.mxu0 %v1381
    %1659 = vmatpush.bf16.msra.mxu0 %v1380
    %1660 = vmatpush.bf16.msra.mxu0 %v1379
    %1661 = vmatmul.bf16.gmra.mxu0 %v574
    %v1662 = vpop.f32.mrf.mxu0
    %v1663 = vadd.f32 %v1649, %v1662
    %v1664 = vpop.f32.mrf.mxu0
    %v1665 = vadd.f32 %v1651, %v1664
    %1666 = vdwg.mxu0
    %1667 = vmatpush.bf16.msra.mxu0 %v1394
    %1668 = vmatpush.bf16.msra.mxu0 %v1393
    %1669 = vmatpush.bf16.msra.mxu0 %v1392
    %1670 = vmatpush.bf16.msra.mxu0 %v1391
    %1671 = vmatpush.bf16.msra.mxu0 %v1390
    %1672 = vmatpush.bf16.msra.mxu0 %v1389
    %1673 = vmatpush.bf16.msra.mxu0 %v1388
    %1674 = vmatpush.bf16.msra.mxu0 %v1387
    %1675 = vmatmul.bf16.gmra.mxu0 %v575
    %v1676 = vpop.f32.mrf.mxu0
    %v1677 = vadd.f32 %v1663, %v1676
    %v1678 = vpop.f32.mrf.mxu0
    %v1679 = vadd.f32 %v1665, %v1678
    %1680 = vdwg.mxu0
    %1681 = vmatpush.bf16.msra.mxu0 %v1402
    %1682 = vmatpush.bf16.msra.mxu0 %v1401
    %1683 = vmatpush.bf16.msra.mxu0 %v1400
    %1684 = vmatpush.bf16.msra.mxu0 %v1399
    %1685 = vmatpush.bf16.msra.mxu0 %v1398
    %1686 = vmatpush.bf16.msra.mxu0 %v1397
    %1687 = vmatpush.bf16.msra.mxu0 %v1396
    %1688 = vmatpush.bf16.msra.mxu0 %v1395
    %1689 = vmatmul.bf16.gmra.mxu0 %v576
    %v1690 = vpop.f32.mrf.mxu0
    %v1691 = vadd.f32 %v1677, %v1690
    %v1692 = vpop.f32.mrf.mxu0
    %v1693 = vadd.f32 %v1679, %v1692
    %1694 = vdwg.mxu0
    %1695 = vmatpush.bf16.msra.mxu0 %v1410
    %1696 = vmatpush.bf16.msra.mxu0 %v1409
    %1697 = vmatpush.bf16.msra.mxu0 %v1408
    %1698 = vmatpush.bf16.msra.mxu0 %v1407
    %1699 = vmatpush.bf16.msra.mxu0 %v1406
    %1700 = vmatpush.bf16.msra.mxu0 %v1405
    %1701 = vmatpush.bf16.msra.mxu0 %v1404
    %1702 = vmatpush.bf16.msra.mxu0 %v1403
    %1703 = vmatmul.bf16.gmra.mxu0 %v577
    %v1704 = vpop.f32.mrf.mxu0
    %v1705 = vadd.f32 %v1691, %v1704
    %v1706 = vpop.f32.mrf.mxu0
    %v1707 = vadd.f32 %v1693, %v1706
    %1708 = vdwg.mxu0
    %1709 = vmatpush.bf16.msra.mxu0 %v1418
    %1710 = vmatpush.bf16.msra.mxu0 %v1417
    %1711 = vmatpush.bf16.msra.mxu0 %v1416
    %1712 = vmatpush.bf16.msra.mxu0 %v1415
    %1713 = vmatpush.bf16.msra.mxu0 %v1414
    %1714 = vmatpush.bf16.msra.mxu0 %v1413
    %1715 = vmatpush.bf16.msra.mxu0 %v1412
    %1716 = vmatpush.bf16.msra.mxu0 %v1411
    %1717 = vmatmul.bf16.gmra.mxu0 %v578
    %v1718 = vpop.f32.mrf.mxu0
    %v1719 = vadd.f32 %v1705, %v1718
    %v1720 = vpop.f32.mrf.mxu0
    %v1721 = vadd.f32 %v1707, %v1720
    %1722 = vdwg.mxu0
    %1723 = vmatpush.bf16.msra.mxu0 %v1426
    %1724 = vmatpush.bf16.msra.mxu0 %v1425
    %1725 = vmatpush.bf16.msra.mxu0 %v1424
    %1726 = vmatpush.bf16.msra.mxu0 %v1423
    %1727 = vmatpush.bf16.msra.mxu0 %v1422
    %1728 = vmatpush.bf16.msra.mxu0 %v1421
    %1729 = vmatpush.bf16.msra.mxu0 %v1420
    %1730 = vmatpush.bf16.msra.mxu0 %v1419
    %1731 = vmatmul.bf16.gmra.mxu0 %v579
    %v1732 = vpop.f32.mrf.mxu0
    %v1733 = vadd.f32 %v1719, %v1732
    %v1734 = vpop.f32.mrf.mxu0
    %v1735 = vadd.f32 %v1721, %v1734
    %1736 = vdwg.mxu0
    %1737 = vmatpush.bf16.msra.mxu0 %v1434
    %1738 = vmatpush.bf16.msra.mxu0 %v1433
    %1739 = vmatpush.bf16.msra.mxu0 %v1432
    %1740 = vmatpush.bf16.msra.mxu0 %v1431
    %1741 = vmatpush.bf16.msra.mxu0 %v1430
    %1742 = vmatpush.bf16.msra.mxu0 %v1429
    %1743 = vmatpush.bf16.msra.mxu0 %v1428
    %1744 = vmatpush.bf16.msra.mxu0 %v1427
    %1745 = vmatmul.bf16.gmra.mxu0 %v580
    %v1746 = vpop.f32.mrf.mxu0
    %v1747 = vadd.f32 %v1733, %v1746
    %v1748 = vpop.f32.mrf.mxu0
    %v1749 = vadd.f32 %v1735, %v1748
    %1750 = vdwg.mxu0
    %1751 = vmatpush.bf16.msra.mxu0 %v1442
    %1752 = vmatpush.bf16.msra.mxu0 %v1441
    %1753 = vmatpush.bf16.msra.mxu0 %v1440
    %1754 = vmatpush.bf16.msra.mxu0 %v1439
    %1755 = vmatpush.bf16.msra.mxu0 %v1438
    %1756 = vmatpush.bf16.msra.mxu0 %v1437
    %1757 = vmatpush.bf16.msra.mxu0 %v1436
    %1758 = vmatpush.bf16.msra.mxu0 %v1435
    %1759 = vmatmul.bf16.gmra.mxu0 %v581
    %v1760 = vpop.f32.mrf.mxu0
    %v1761 = vadd.f32 %v1747, %v1760
    %v1762 = vpop.f32.mrf.mxu0
    %v1763 = vadd.f32 %v1749, %v1762
    %1764 = vdwg.mxu0
    %1765 = vmatpush.bf16.msra.mxu0 %v1450
    %1766 = vmatpush.bf16.msra.mxu0 %v1449
    %1767 = vmatpush.bf16.msra.mxu0 %v1448
    %1768 = vmatpush.bf16.msra.mxu0 %v1447
    %1769 = vmatpush.bf16.msra.mxu0 %v1446
    %1770 = vmatpush.bf16.msra.mxu0 %v1445
    %1771 = vmatpush.bf16.msra.mxu0 %v1444
    %1772 = vmatpush.bf16.msra.mxu0 %v1443
    %1773 = vmatmul.bf16.gmra.mxu0 %v582
    %v1774 = vpop.f32.mrf.mxu0
    %v1775 = vadd.f32 %v1761, %v1774
    %v1776 = vpop.f32.mrf.mxu0
    %v1777 = vadd.f32 %v1763, %v1776
    %1778 = vdwg.mxu0
    %1779 = vmatpush.bf16.msra.mxu0 %v1458
    %1780 = vmatpush.bf16.msra.mxu0 %v1457
    %1781 = vmatpush.bf16.msra.mxu0 %v1456
    %1782 = vmatpush.bf16.msra.mxu0 %v1455
    %1783 = vmatpush.bf16.msra.mxu0 %v1454
    %1784 = vmatpush.bf16.msra.mxu0 %v1453
    %1785 = vmatpush.bf16.msra.mxu0 %v1452
    %1786 = vmatpush.bf16.msra.mxu0 %v1451
    %1787 = vmatmul.bf16.gmra.mxu0 %v583
    %v1788 = vpop.f32.mrf.mxu0
    %v1789 = vadd.f32 %v1775, %v1788
    %v1790 = vpop.f32.mrf.mxu0
    %v1791 = vadd.f32 %v1777, %v1790
    %1792 = vdwg.mxu0
    %1793 = vmatpush.bf16.msra.mxu0 %v1466
    %1794 = vmatpush.bf16.msra.mxu0 %v1465
    %1795 = vmatpush.bf16.msra.mxu0 %v1464
    %1796 = vmatpush.bf16.msra.mxu0 %v1463
    %1797 = vmatpush.bf16.msra.mxu0 %v1462
    %1798 = vmatpush.bf16.msra.mxu0 %v1461
    %1799 = vmatpush.bf16.msra.mxu0 %v1460
    %1800 = vmatpush.bf16.msra.mxu0 %v1459
    %1801 = vmatmul.bf16.gmra.mxu0 %v584
    %v1802 = vpop.f32.mrf.mxu0
    %v1803 = vadd.f32 %v1789, %v1802
    %v1804 = vpop.f32.mrf.mxu0
    %v1805 = vadd.f32 %v1791, %v1804
    %1806 = vdwg.mxu0
    %1807 = vmatpush.bf16.msra.mxu0 %v1474
    %1808 = vmatpush.bf16.msra.mxu0 %v1473
    %1809 = vmatpush.bf16.msra.mxu0 %v1472
    %1810 = vmatpush.bf16.msra.mxu0 %v1471
    %1811 = vmatpush.bf16.msra.mxu0 %v1470
    %1812 = vmatpush.bf16.msra.mxu0 %v1469
    %1813 = vmatpush.bf16.msra.mxu0 %v1468
    %1814 = vmatpush.bf16.msra.mxu0 %v1467
    %1815 = vmatmul.bf16.gmra.mxu0 %v585
    %v1816 = vpop.f32.mrf.mxu0
    %v1817 = vadd.f32 %v1803, %v1816
    %v1818 = vpop.f32.mrf.mxu0
    %v1819 = vadd.f32 %v1805, %v1818
    %1820 = vdwg.mxu0
    %1821 = vmatpush.bf16.msra.mxu0 %v1482
    %1822 = vmatpush.bf16.msra.mxu0 %v1481
    %1823 = vmatpush.bf16.msra.mxu0 %v1480
    %1824 = vmatpush.bf16.msra.mxu0 %v1479
    %1825 = vmatpush.bf16.msra.mxu0 %v1478
    %1826 = vmatpush.bf16.msra.mxu0 %v1477
    %1827 = vmatpush.bf16.msra.mxu0 %v1476
    %1828 = vmatpush.bf16.msra.mxu0 %v1475
    %1829 = vmatmul.bf16.gmra.mxu0 %v586
    %v1830 = vpop.f32.mrf.mxu0
    %v1831 = vadd.f32 %v1817, %v1830
    %v1832 = vpop.f32.mrf.mxu0
    %v1833 = vadd.f32 %v1819, %v1832
    %1834 = vdwg.mxu0
    %1835 = vst [vmem:[#allocation10] sm:$0xff] %v1831
    %1836 = vst [vmem:[#allocation10 + $0x8] sm:$0xff] %v1833
    // Predicated region
    $region34: #{tpu_custom_call.1} parent=1 // pred_check
      _
    $region35: #{tpu_custom_call.1} parent=1 // pred_check_branch
      %1838 = sbr.rel (0) target = $region37
    $region36: #{tpu_custom_call.1} parent=1 // pred_region
      %1840 = vsyncadd [#allocation4], 0
      %s1841 = sshll.u32 [#allocation10], 4
      %s1842 = int_to_ptr.vmem [resolvable:$true] %s1841
      %s1843 = sshll.u32 %s4, 4
      %s1844 = int_to_ptr.hbm [resolvable:$true] %s1843
      %1849 = dma.vmem_to_hbm [thread:$0]  %s1842, 256, %s1844, [#allocation4], 128, 128, 8
    $region37: #{tpu_custom_call.1} parent=1 // pred_fallthru
      _
    // Predicated region
    $region38: #{tpu_custom_call.1} parent=1 // pred_check
      _
    $region39: #{tpu_custom_call.1} parent=1 // pred_check_branch
      %1851 = sbr.rel (0) target = $region41
    $region40: #{tpu_custom_call.1} parent=1 // pred_region
      %1853 = dma.done [#allocation4], 256
    $region41: #{tpu_custom_call.1} parent=1 // pred_fallthru
      _
    %1854 = vsyncpa [#allocation3], 1
    %1855 = vsyncpa [#allocation6], 1
    %1856 = vsyncpa [#allocation9], 1
    %1857 = vsyncpa [#allocation4], 1

</llo_original>
